<compile_context>
chip_gen: v7x
topology: tpu7x:2x2x1
jax: 0.10.0
libtpu: 0.0.40
codegen_flags: <defaults>
</compile_context>

<pallas_src>
import functools
import math

import jax
import jax.numpy as jnp
from jax.experimental import pallas as pl
from jax.experimental.pallas import tpu as pltpu


# ---------------------------------------------------------------------------
# Shared feature computation: distances (M, TN) -> radial symmetry features.
# ---------------------------------------------------------------------------
def _write_features(r, nbrsz, rc_ref, rs_ref, re_ref, at_ref, out_ref,
                    num_params, num_types):
    """r, nbrsz: (M, TN).  Writes the (T*P, TN) feature rows into out_ref."""
    pi = jnp.float32(math.pi)
    # Atom-type masks: computed once, reused for every radial parameter.
    masks = [(nbrsz == at_ref[t]).astype(jnp.float32) for t in range(num_types)]
    for p in range(num_params):                 # static, small P
        rc_p = rc_ref[p]                        # scalars from SMEM
        rs_p = rs_ref[p]
        e_p = re_ref[p]
        gauss = jnp.exp(-e_p * (r - rs_p) ** 2)                     # EUP, once/p
        fc = jnp.where(r <= rc_p,
                       0.5 * (jnp.cos(pi * r / rc_p) + 1.0), 0.0)   # once/p
        rsf = gauss * fc                                            # (M, TN)
        for t in range(num_types):
            idx = t * num_params + p
            out_ref[idx:idx + 1, :] = jnp.sum(masks[t] * rsf, axis=0,
                                              keepdims=True)        # (1, TN)


# ---------------------------------------------------------------------------
# Path A (small N): in-kernel gather via chunked bf16 one-hot MXU matmuls.
# ---------------------------------------------------------------------------
def _atomic_conv_gather_kernel(x_hi_ref, x_lo_ref, xt_ref, nbrs_ref, nbrsz_ref,
                               rc_ref, rs_ref, re_ref, at_ref, out_ref,
                               *, num_params, num_types, n_chunk):
    """One (batch, N-tile) block.

    x_hi_ref / x_lo_ref : (d, N)  bf16 hi/lo split of transposed coordinates
    xt_ref              : (d, TN) f32 coordinates of this tile (transposed)
    nbrs_ref            : (M, TN) i32 neighbor indices (global 0..N-1)
    nbrsz_ref           : (M, TN) i32 neighbor atomic numbers
    out_ref             : (T*P, TN) features, feature index = t*P + p
    """
    d, n_all = x_hi_ref.shape
    m, tn = nbrs_ref.shape

    # One (1, TN) index row per neighbor slot, loaded once.
    nb_rows = [nbrs_ref[mi:mi + 1, :] for mi in range(m)]
    accs = [jnp.zeros((d, tn), jnp.float32) for _ in range(m)]

    # Chunked contraction over N: only a (chunk, TN) bf16 one-hot slab is live.
    for lo in range(0, n_all, n_chunk):                 # static Python loop
        ck = min(n_chunk, n_all - lo)
        xh = x_hi_ref[:, lo:lo + ck]                    # (d, ck) bf16
        xl = x_lo_ref[:, lo:lo + ck]                    # (d, ck) bf16
        iota = jax.lax.broadcasted_iota(jnp.int32, (ck, 1), 0) + lo
        for mi in range(m):
            # TODO(synk): out-of-range / padded neighbor indices match nothing
            # and gather zero coordinates (documented divergence from PyTorch,
            # which would raise on malformed indices).
            oh = (iota == nb_rows[mi]).astype(jnp.bfloat16)         # (ck, TN)
            accs[mi] = (accs[mi]
                        + jnp.dot(xh, oh, preferred_element_type=jnp.float32)
                        + jnp.dot(xl, oh, preferred_element_type=jnp.float32))

    xt = xt_ref[...]                                    # (d, TN) f32
    r_rows = []
    for mi in range(m):
        diff = accs[mi] - xt                            # (d, TN)
        r2 = jnp.zeros((1, tn), jnp.float32)
        for k in range(d):                              # d=3 cheap vreg adds
            dk = diff[k:k + 1, :]
            r2 = r2 + dk * dk
        r_rows.append(jnp.sqrt(r2))                     # (1, TN)
    r = jnp.concatenate(r_rows, axis=0)                 # (M, TN)

    _write_features(r, nbrsz_ref[...], rc_ref, rs_ref, re_ref, at_ref, out_ref,
                    num_params, num_types)


# ---------------------------------------------------------------------------
# Path B (large N): neighbor coordinates pre-gathered in the wrapper.
# ---------------------------------------------------------------------------
def _atomic_conv_pregather_kernel(nct_ref, xt_ref, nbrsz_ref,
                                  rc_ref, rs_ref, re_ref, at_ref, out_ref,
                                  *, num_params, num_types):
    """nct_ref: (d, M, TN) gathered neighbor coords; rest as in Path A."""
    nct = nct_ref[...]                                  # (d, M, TN) f32
    xt = xt_ref[...]                                    # (d, TN) f32
    diff = nct - xt[:, None, :]                         # (d, M, TN)
    r = jnp.sqrt(jnp.sum(diff * diff, axis=0))          # (M, TN); d-axis = vreg adds
    _write_features(r, nbrsz_ref[...], rc_ref, rs_ref, re_ref, at_ref, out_ref,
                    num_params, num_types)


# ---------------------------------------------------------------------------
# BatchNorm1d(num_features=N), training mode, on the transposed (B, C, N) layer.
# ---------------------------------------------------------------------------
def _batch_norm_kernel(x_ref, gamma_ref, beta_ref, out_ref, *, eps):
    x = x_ref[...]                                      # (B, C, TN)
    count = x.shape[0] * x.shape[1]
    s = jnp.sum(jnp.sum(x, axis=1, keepdims=True), axis=0, keepdims=True)
    ss = jnp.sum(jnp.sum(x * x, axis=1, keepdims=True), axis=0, keepdims=True)
    mean = s / count                                    # (1, 1, TN)
    var = jnp.maximum(ss / count - mean * mean, 0.0)    # biased, one pass
    out_ref[...] = ((x - mean) * jax.lax.rsqrt(var + eps)
                    * gamma_ref[...] + beta_ref[...])


# ---------------------------------------------------------------------------
# Wrappers
# ---------------------------------------------------------------------------
def _round_up(x, m):
    return ((x + m - 1) // m) * m


def _pad_atoms(X, Nbrs, Nbrs_Z):
    """Pad the atom axis N up to a multiple of 128 (only when N > 128)."""
    B, N, d = X.shape
    if N % 128 == 0 or N <= 128:
        return X, Nbrs, Nbrs_Z, N
    Np = _round_up(N, 128)
    pad = Np - N
    Xp = jnp.pad(X, ((0, 0), (0, pad), (0, 0)))
    # Padded rows: neighbor index 0 (valid, harmless) and Z sentinel -1
    # (never a real atom type), so padded atoms contribute zero features.
    Nbrs_p = jnp.pad(Nbrs, ((0, 0), (0, pad), (0, 0)))
    Nbrs_Z_p = jnp.pad(Nbrs_Z, ((0, 0), (0, pad), (0, 0)), constant_values=-1)
    return Xp, Nbrs_p, Nbrs_Z_p, Np


def atomic_convolution_layer(X, Nbrs, Nbrs_Z, rc, rs, re, atom_types,
                             *, pregather=None, n_chunk=256):
    """Radial-symmetry layer, returned TRANSPOSED as (B, T*P, N_padded)."""
    B, N0, d = X.shape
    M = Nbrs.shape[-1]
    P = int(rc.shape[0])
    T = int(atom_types.shape[0])
    TP = T * P

    X = X.astype(jnp.float32)
    Xp, Nbrs_p, Nbrs_Z_p, N = _pad_atoms(X, Nbrs.astype(jnp.int32),
                                         Nbrs_Z.astype(jnp.int32))
    TN = 128 if N % 128 == 0 else N          # N <= 128 => one full-N tile
    nt = N // TN
    if pregather is None:
        pregather = N >= 512                 # one-hot gather only for small N

    Xt = jnp.swapaxes(Xp, 1, 2)              # (B, d, N) f32 — d off the lanes
    nbrsz_t = jnp.swapaxes(Nbrs_Z_p, 1, 2)   # (B, M, N) i32

    grid = (B, nt)
    out_shape = jax.ShapeDtypeStruct((B, TP, N), jnp.float32)
    out_spec = pl.BlockSpec((None, TP, TN), lambda b, n: (b, 0, n))
    smem = pl.BlockSpec(memory_space=pltpu.MemorySpace.SMEM)
    cparams = pltpu.CompilerParams(
        dimension_semantics=("parallel", "parallel"))
    # NOTE: per-step VMEM footprint is small after the layout/chunking fixes,
    # so the default scoped-VMEM limit is kept (fits v7x's 64 MiB).

    if pregather:
        # Hoist the gather to XLA: only O(B*M*N*d) elements, kernel is VPU/EUP.
        gath = jax.vmap(lambda x, idx: x[idx])(Xp, Nbrs_p)      # (B, N, M, d)
        gath_t = jnp.transpose(gath, (0, 3, 2, 1))              # (B, d, M, N)
        kernel = functools.partial(_atomic_conv_pregather_kernel,
                                   num_params=P, num_types=T)
        return pl.pallas_call(
            kernel, out_shape=out_shape, grid=grid,
            in_specs=[
                pl.BlockSpec((None, d, M, TN), lambda b, n: (b, 0, 0, n)),
                pl.BlockSpec((None, d, TN), lambda b, n: (b, 0, n)),
                pl.BlockSpec((None, M, TN), lambda b, n: (b, 0, n)),
                smem, smem, smem, smem,
            ],
            out_specs=out_spec, compiler_params=cparams,
        )(gath_t, Xt, nbrsz_t, rc, rs, re, atom_types)

    # hi/lo bf16 split of the coordinates: bf16 one-hot matmuls, ~2e-5 error.
    x_hi = Xt.astype(jnp.bfloat16)
    x_lo = (Xt - x_hi.astype(jnp.float32)).astype(jnp.bfloat16)
    nbrs_t = jnp.swapaxes(Nbrs_p, 1, 2)                         # (B, M, N)
    kernel = functools.partial(_atomic_conv_gather_kernel,
                               num_params=P, num_types=T, n_chunk=n_chunk)
    return pl.pallas_call(
        kernel, out_shape=out_shape, grid=grid,
        in_specs=[
            pl.BlockSpec((None, d, N), lambda b, n: (b, 0, 0)),   # x_hi (full)
            pl.BlockSpec((None, d, N), lambda b, n: (b, 0, 0)),   # x_lo (full)
            pl.BlockSpec((None, d, TN), lambda b, n: (b, 0, n)),  # x tile f32
            pl.BlockSpec((None, M, TN), lambda b, n: (b, 0, n)),  # Nbrs^T
            pl.BlockSpec((None, M, TN), lambda b, n: (b, 0, n)),  # Nbrs_Z^T
            smem, smem, smem, smem,
        ],
        out_specs=out_spec, compiler_params=cparams,
    )(x_hi, x_lo, Xt, nbrs_t, nbrsz_t, rc, rs, re, atom_types)


def batch_norm_1d_t(layer_t, gamma, beta, eps=1e-5):
    """BatchNorm1d(input_shape=N) applied to the transposed (B, C, N) layer."""
    B, C, N = layer_t.shape
    TN = 128 if N % 128 == 0 else N
    nt = N // TN
    g = gamma.reshape(1, 1, N).astype(jnp.float32)
    b = beta.reshape(1, 1, N).astype(jnp.float32)
    kernel = functools.partial(_batch_norm_kernel, eps=eps)
    return pl.pallas_call(
        kernel,
        out_shape=jax.ShapeDtypeStruct((B, C, N), jnp.float32),
        grid=(nt,),
        in_specs=[
            pl.BlockSpec((B, C, TN), lambda n: (0, 0, n)),
            pl.BlockSpec((1, 1, TN), lambda n: (0, 0, n)),
            pl.BlockSpec((1, 1, TN), lambda n: (0, 0, n)),
        ],
        out_specs=pl.BlockSpec((B, C, TN), lambda n: (0, 0, n)),
        compiler_params=pltpu.CompilerParams(
            dimension_semantics=("parallel",)),
    )(layer_t, g, b)


def atomic_convolution_forward(X, Nbrs, Nbrs_Z, rc, rs, re, atom_types,
                               gamma, beta, *, pregather=None, n_chunk=256):
    B, N0, d = X.shape
    layer_t = atomic_convolution_layer(X, Nbrs, Nbrs_Z, rc, rs, re, atom_types,
                                       pregather=pregather, n_chunk=n_chunk)
    Np = layer_t.shape[-1]
    g = gamma.astype(jnp.float32)
    b = beta.astype(jnp.float32)
    if Np != N0:                       # padded atom lanes: gamma=1, beta=0
        g = jnp.pad(g, (0, Np - N0), constant_values=1.0)
        b = jnp.pad(b, (0, Np - N0))
    normed_t = batch_norm_1d_t(layer_t, g, b)                   # (B, T*P, Np)
    # TODO(synk): BatchNorm running-mean/var buffer updates (inference mode)
    # are not emulated; forward matches PyTorch training-mode batch statistics.
    # TODO(synk): consumers happy with the (B, T*P, N) layout can skip this
    # final transpose (one extra XLA HBM pass).
    return jnp.swapaxes(normed_t, 1, 2)[:, :N0, :]              # (B, N, T*P)


# ---------------------------------------------------------------------------
# Pure-JAX reference (replicates the PyTorch module, training-mode batch norm)
# ---------------------------------------------------------------------------
def _reference_forward(X, Nbrs, Nbrs_Z, rc, rs, re, atom_types, gamma, beta,
                       eps=1e-5):
    B, N, d = X.shape
    gathered = jax.vmap(lambda x, idx: x[idx.reshape(-1)])(X, Nbrs)
    D = gathered.reshape(B, N, Nbrs.shape[-1], d) - X[:, :, None, :]
    R = jnp.sqrt(jnp.sum(D * D, axis=-1))
    R1 = R[None]
    rc_ = rc.reshape(-1, 1, 1, 1)
    rs_ = rs.reshape(-1, 1, 1, 1)
    re_ = re.reshape(-1, 1, 1, 1)
    K = jnp.exp(-re_ * (R1 - rs_) ** 2)
    FC = jnp.where(R1 <= rc_, 0.5 * (jnp.cos(jnp.pi * R1 / rc_) + 1.0), 0.0)
    rsf = K * FC
    sym = []
    for t in range(atom_types.shape[0]):
        cond = (Nbrs_Z == atom_types[t]).astype(jnp.float32)[None]
        sym.append(jnp.sum(cond * rsf, axis=3))
    layer = jnp.concatenate(sym, axis=0).transpose(1, 2, 0)      # (B, N, T*P)
    mean = jnp.mean(layer, axis=(0, 2), keepdims=True)
    var = jnp.mean((layer - mean) ** 2, axis=(0, 2), keepdims=True)
    xn = (layer - mean) / jnp.sqrt(var + eps)
    return xn * gamma.reshape(1, N, 1) + beta.reshape(1, N, 1)


if __name__ == "__main__":
    atom_types_list = [1, 6, 8]
    radial_params = [(12.0, 0.0, 0.04), (12.0, 2.0, 0.04),
                     (12.0, 4.0, 0.04), (6.0, 1.0, 0.2)]
    rc = jnp.array([p[0] for p in radial_params], dtype=jnp.float32)
    rs = jnp.array([p[1] for p in radial_params], dtype=jnp.float32)
    re = jnp.array([p[2] for p in radial_params], dtype=jnp.float32)
    atom_types = jnp.array(atom_types_list, dtype=jnp.int32)
    TP = len(atom_types_list) * len(radial_params)

    def run_case(key, B, N, M, *, pregather, n_chunk):
        kx, kn, kz, kg, kb = jax.random.split(key, 5)
        X = jax.random.uniform(kx, (B, N, 3), dtype=jnp.float32,
                               minval=0.0, maxval=6.0)
        Nbrs = jax.random.randint(kn, (B, N, M), 0, N, dtype=jnp.int32)
        Nbrs_Z = atom_types[jax.random.randint(kz, (B, N, M), 0,
                                               len(atom_types_list))]
        gamma = jax.random.uniform(kg, (N,), dtype=jnp.float32,
                                   minval=0.5, maxval=1.5)
        beta = jax.random.uniform(kb, (N,), dtype=jnp.float32,
                                  minval=-0.5, maxval=0.5)
        out = atomic_convolution_forward(X, Nbrs, Nbrs_Z, rc, rs, re,
                                         atom_types, gamma, beta,
                                         pregather=pregather, n_chunk=n_chunk)
        out = jax.block_until_ready(out)
        ref = _reference_forward(X, Nbrs, Nbrs_Z, rc, rs, re, atom_types,
                                 gamma, beta)
        assert out.shape == (B, N, TP), out.shape
        err = float(jnp.max(jnp.abs(out - ref)))
        # hi/lo bf16 gather keeps coordinate error ~2e-5 -> feature error <~3e-4.
        assert jnp.allclose(out, ref, rtol=2e-3, atol=2e-3), err

    key = jax.random.PRNGKey(0)
    k1, k2, k3 = jax.random.split(key, 3)
    # Small molecule: single full-N tile, in-kernel bf16 one-hot gather path.
    run_case(k1, B=2, N=16, M=8, pregather=False, n_chunk=256)
    # Non-aligned N (padded 200 -> 256), 2x128 tiles, chunked one-hot gather.
    run_case(k2, B=2, N=200, M=12, pregather=False, n_chunk=128)
    # Same inputs through the wrapper pre-gather path (auto-selected for N>=512).
    run_case(k3, B=2, N=200, M=12, pregather=True, n_chunk=128)
    print("KERNEL_OK")
</pallas_src>

<mosaic_0001>
module attributes {stable_mosaic.version = 11 : i64} {
  func.func @_atomic_conv_gather_kernel(%arg0: i32, %arg1: i32, %arg2: memref<1x3x16xbf16, #tpu.memory_space<vmem>>, %arg3: memref<1x3x16xbf16, #tpu.memory_space<vmem>>, %arg4: memref<1x3x16xf32, #tpu.memory_space<vmem>>, %arg5: memref<1x8x16xi32, #tpu.memory_space<vmem>>, %arg6: memref<1x8x16xi32, #tpu.memory_space<vmem>>, %arg7: memref<4xf32, #tpu.memory_space<smem>>, %arg8: memref<4xf32, #tpu.memory_space<smem>>, %arg9: memref<4xf32, #tpu.memory_space<smem>>, %arg10: memref<3xi32, #tpu.memory_space<smem>>, %arg11: memref<1x12x16xf32, #tpu.memory_space<vmem>>) attributes {dimension_semantics = [#tpu.dimension_semantics<parallel>, #tpu.dimension_semantics<parallel>], iteration_bounds = array<i64: 2, 1>, scalar_prefetch = 0 : i64, scratch_operands = 0 : i64, tpu.core_type = #tpu.core_type<tc>, window_params = [{transform_indices = @transform_0, window_bounds = array<i64: 1, 3, 16>}, {transform_indices = @transform_1, window_bounds = array<i64: 1, 3, 16>}, {transform_indices = @transform_2, window_bounds = array<i64: 1, 3, 16>}, {transform_indices = @transform_3, window_bounds = array<i64: 1, 8, 16>}, {transform_indices = @transform_4, window_bounds = array<i64: 1, 8, 16>}, {transform_indices = @transform_5, window_bounds = array<i64: 4>}, {transform_indices = @transform_6, window_bounds = array<i64: 4>}, {transform_indices = @transform_7, window_bounds = array<i64: 4>}, {transform_indices = @transform_8, window_bounds = array<i64: 3>}, {transform_indices = @transform_9, window_bounds = array<i64: 1, 12, 16>}]} {
    %c0 = arith.constant 0 : index
    %c0_0 = arith.constant 0 : index
    %c0_1 = arith.constant 0 : index
    %0 = vector.load %arg5[%c0, %c0_0, %c0_1] : memref<1x8x16xi32, #tpu.memory_space<vmem>>, vector<1x1x16xi32>
    %1 = vector.shape_cast %0 : vector<1x1x16xi32> to vector<1x16xi32>
    %c0_2 = arith.constant 0 : index
    %c1 = arith.constant 1 : index
    %c0_3 = arith.constant 0 : index
    %2 = vector.load %arg5[%c0_2, %c1, %c0_3] : memref<1x8x16xi32, #tpu.memory_space<vmem>>, vector<1x1x16xi32>
    %3 = vector.shape_cast %2 : vector<1x1x16xi32> to vector<1x16xi32>
    %c0_4 = arith.constant 0 : index
    %c2 = arith.constant 2 : index
    %c0_5 = arith.constant 0 : index
    %4 = vector.load %arg5[%c0_4, %c2, %c0_5] : memref<1x8x16xi32, #tpu.memory_space<vmem>>, vector<1x1x16xi32>
    %5 = vector.shape_cast %4 : vector<1x1x16xi32> to vector<1x16xi32>
    %c0_6 = arith.constant 0 : index
    %c3 = arith.constant 3 : index
    %c0_7 = arith.constant 0 : index
    %6 = vector.load %arg5[%c0_6, %c3, %c0_7] : memref<1x8x16xi32, #tpu.memory_space<vmem>>, vector<1x1x16xi32>
    %7 = vector.shape_cast %6 : vector<1x1x16xi32> to vector<1x16xi32>
    %c0_8 = arith.constant 0 : index
    %c4 = arith.constant 4 : index
    %c0_9 = arith.constant 0 : index
    %8 = vector.load %arg5[%c0_8, %c4, %c0_9] : memref<1x8x16xi32, #tpu.memory_space<vmem>>, vector<1x1x16xi32>
    %9 = vector.shape_cast %8 : vector<1x1x16xi32> to vector<1x16xi32>
    %c0_10 = arith.constant 0 : index
    %c5 = arith.constant 5 : index
    %c0_11 = arith.constant 0 : index
    %10 = vector.load %arg5[%c0_10, %c5, %c0_11] : memref<1x8x16xi32, #tpu.memory_space<vmem>>, vector<1x1x16xi32>
    %11 = vector.shape_cast %10 : vector<1x1x16xi32> to vector<1x16xi32>
    %c0_12 = arith.constant 0 : index
    %c6 = arith.constant 6 : index
    %c0_13 = arith.constant 0 : index
    %12 = vector.load %arg5[%c0_12, %c6, %c0_13] : memref<1x8x16xi32, #tpu.memory_space<vmem>>, vector<1x1x16xi32>
    %13 = vector.shape_cast %12 : vector<1x1x16xi32> to vector<1x16xi32>
    %c0_14 = arith.constant 0 : index
    %c7 = arith.constant 7 : index
    %c0_15 = arith.constant 0 : index
    %14 = vector.load %arg5[%c0_14, %c7, %c0_15] : memref<1x8x16xi32, #tpu.memory_space<vmem>>, vector<1x1x16xi32>
    %15 = vector.shape_cast %14 : vector<1x1x16xi32> to vector<1x16xi32>
    %cst = arith.constant 0.000000e+00 : f32
    %16 = vector.broadcast %cst : f32 to vector<3x16xf32>
    %cst_16 = arith.constant 0.000000e+00 : f32
    %17 = vector.broadcast %cst_16 : f32 to vector<3x16xf32>
    %cst_17 = arith.constant 0.000000e+00 : f32
    %18 = vector.broadcast %cst_17 : f32 to vector<3x16xf32>
    %cst_18 = arith.constant 0.000000e+00 : f32
    %19 = vector.broadcast %cst_18 : f32 to vector<3x16xf32>
    %cst_19 = arith.constant 0.000000e+00 : f32
    %20 = vector.broadcast %cst_19 : f32 to vector<3x16xf32>
    %cst_20 = arith.constant 0.000000e+00 : f32
    %21 = vector.broadcast %cst_20 : f32 to vector<3x16xf32>
    %cst_21 = arith.constant 0.000000e+00 : f32
    %22 = vector.broadcast %cst_21 : f32 to vector<3x16xf32>
    %cst_22 = arith.constant 0.000000e+00 : f32
    %23 = vector.broadcast %cst_22 : f32 to vector<3x16xf32>
    %c0_23 = arith.constant 0 : index
    %c0_24 = arith.constant 0 : index
    %c0_25 = arith.constant 0 : index
    %24 = vector.load %arg2[%c0_23, %c0_24, %c0_25] : memref<1x3x16xbf16, #tpu.memory_space<vmem>>, vector<1x3x16xbf16>
    %25 = vector.shape_cast %24 : vector<1x3x16xbf16> to vector<3x16xbf16>
    %c0_26 = arith.constant 0 : index
    %c0_27 = arith.constant 0 : index
    %c0_28 = arith.constant 0 : index
    %26 = vector.load %arg3[%c0_26, %c0_27, %c0_28] : memref<1x3x16xbf16, #tpu.memory_space<vmem>>, vector<1x3x16xbf16>
    %27 = vector.shape_cast %26 : vector<1x3x16xbf16> to vector<3x16xbf16>
    %28 = tpu.iota {dimensions = array<i32: 0>} : vector<16x1xi32>
    %c0_i32 = arith.constant 0 : i32
    %29 = vector.broadcast %c0_i32 : i32 to vector<16x1xi32>
    %30 = arith.addi %28, %29 : vector<16x1xi32>
    %31 = vector.broadcast %30 : vector<16x1xi32> to vector<16x16xi32>
    %32 = vector.broadcast %1 : vector<1x16xi32> to vector<16x16xi32>
    %33 = arith.cmpi eq, %31, %32 : vector<16x16xi32>
    %34 = arith.extui %33 : vector<16x16xi1> to vector<16x16xi32>
    %35 = arith.sitofp %34 : vector<16x16xi32> to vector<16x16xf32>
    %36 = arith.truncf %35 : vector<16x16xf32> to vector<16x16xbf16>
    %cst_29 = arith.constant dense<0.000000e+00> : vector<3x16xf32>
    %37 = tpu.matmul %25, %36, %cst_29 {dimension_numbers = #tpu.dot_dimension_numbers<[1], [0], [0], [1], [0, 0, 1, 1], [], []>} : vector<3x16xbf16>, vector<16x16xbf16>, vector<3x16xf32> -> vector<3x16xf32>
    %38 = arith.addf %16, %37 : vector<3x16xf32>
    %cst_30 = arith.constant dense<0.000000e+00> : vector<3x16xf32>
    %39 = tpu.matmul %27, %36, %cst_30 {dimension_numbers = #tpu.dot_dimension_numbers<[1], [0], [0], [1], [0, 0, 1, 1], [], []>} : vector<3x16xbf16>, vector<16x16xbf16>, vector<3x16xf32> -> vector<3x16xf32>
    %40 = arith.addf %38, %39 : vector<3x16xf32>
    %41 = vector.broadcast %30 : vector<16x1xi32> to vector<16x16xi32>
    %42 = vector.broadcast %3 : vector<1x16xi32> to vector<16x16xi32>
    %43 = arith.cmpi eq, %41, %42 : vector<16x16xi32>
    %44 = arith.extui %43 : vector<16x16xi1> to vector<16x16xi32>
    %45 = arith.sitofp %44 : vector<16x16xi32> to vector<16x16xf32>
    %46 = arith.truncf %45 : vector<16x16xf32> to vector<16x16xbf16>
    %cst_31 = arith.constant dense<0.000000e+00> : vector<3x16xf32>
    %47 = tpu.matmul %25, %46, %cst_31 {dimension_numbers = #tpu.dot_dimension_numbers<[1], [0], [0], [1], [0, 0, 1, 1], [], []>} : vector<3x16xbf16>, vector<16x16xbf16>, vector<3x16xf32> -> vector<3x16xf32>
    %48 = arith.addf %17, %47 : vector<3x16xf32>
    %cst_32 = arith.constant dense<0.000000e+00> : vector<3x16xf32>
    %49 = tpu.matmul %27, %46, %cst_32 {dimension_numbers = #tpu.dot_dimension_numbers<[1], [0], [0], [1], [0, 0, 1, 1], [], []>} : vector<3x16xbf16>, vector<16x16xbf16>, vector<3x16xf32> -> vector<3x16xf32>
    %50 = arith.addf %48, %49 : vector<3x16xf32>
    %51 = vector.broadcast %30 : vector<16x1xi32> to vector<16x16xi32>
    %52 = vector.broadcast %5 : vector<1x16xi32> to vector<16x16xi32>
    %53 = arith.cmpi eq, %51, %52 : vector<16x16xi32>
    %54 = arith.extui %53 : vector<16x16xi1> to vector<16x16xi32>
    %55 = arith.sitofp %54 : vector<16x16xi32> to vector<16x16xf32>
    %56 = arith.truncf %55 : vector<16x16xf32> to vector<16x16xbf16>
    %cst_33 = arith.constant dense<0.000000e+00> : vector<3x16xf32>
    %57 = tpu.matmul %25, %56, %cst_33 {dimension_numbers = #tpu.dot_dimension_numbers<[1], [0], [0], [1], [0, 0, 1, 1], [], []>} : vector<3x16xbf16>, vector<16x16xbf16>, vector<3x16xf32> -> vector<3x16xf32>
    %58 = arith.addf %18, %57 : vector<3x16xf32>
    %cst_34 = arith.constant dense<0.000000e+00> : vector<3x16xf32>
    %59 = tpu.matmul %27, %56, %cst_34 {dimension_numbers = #tpu.dot_dimension_numbers<[1], [0], [0], [1], [0, 0, 1, 1], [], []>} : vector<3x16xbf16>, vector<16x16xbf16>, vector<3x16xf32> -> vector<3x16xf32>
    %60 = arith.addf %58, %59 : vector<3x16xf32>
    %61 = vector.broadcast %30 : vector<16x1xi32> to vector<16x16xi32>
    %62 = vector.broadcast %7 : vector<1x16xi32> to vector<16x16xi32>
    %63 = arith.cmpi eq, %61, %62 : vector<16x16xi32>
    %64 = arith.extui %63 : vector<16x16xi1> to vector<16x16xi32>
    %65 = arith.sitofp %64 : vector<16x16xi32> to vector<16x16xf32>
    %66 = arith.truncf %65 : vector<16x16xf32> to vector<16x16xbf16>
    %cst_35 = arith.constant dense<0.000000e+00> : vector<3x16xf32>
    %67 = tpu.matmul %25, %66, %cst_35 {dimension_numbers = #tpu.dot_dimension_numbers<[1], [0], [0], [1], [0, 0, 1, 1], [], []>} : vector<3x16xbf16>, vector<16x16xbf16>, vector<3x16xf32> -> vector<3x16xf32>
    %68 = arith.addf %19, %67 : vector<3x16xf32>
    %cst_36 = arith.constant dense<0.000000e+00> : vector<3x16xf32>
    %69 = tpu.matmul %27, %66, %cst_36 {dimension_numbers = #tpu.dot_dimension_numbers<[1], [0], [0], [1], [0, 0, 1, 1], [], []>} : vector<3x16xbf16>, vector<16x16xbf16>, vector<3x16xf32> -> vector<3x16xf32>
    %70 = arith.addf %68, %69 : vector<3x16xf32>
    %71 = vector.broadcast %30 : vector<16x1xi32> to vector<16x16xi32>
    %72 = vector.broadcast %9 : vector<1x16xi32> to vector<16x16xi32>
    %73 = arith.cmpi eq, %71, %72 : vector<16x16xi32>
    %74 = arith.extui %73 : vector<16x16xi1> to vector<16x16xi32>
    %75 = arith.sitofp %74 : vector<16x16xi32> to vector<16x16xf32>
    %76 = arith.truncf %75 : vector<16x16xf32> to vector<16x16xbf16>
    %cst_37 = arith.constant dense<0.000000e+00> : vector<3x16xf32>
    %77 = tpu.matmul %25, %76, %cst_37 {dimension_numbers = #tpu.dot_dimension_numbers<[1], [0], [0], [1], [0, 0, 1, 1], [], []>} : vector<3x16xbf16>, vector<16x16xbf16>, vector<3x16xf32> -> vector<3x16xf32>
    %78 = arith.addf %20, %77 : vector<3x16xf32>
    %cst_38 = arith.constant dense<0.000000e+00> : vector<3x16xf32>
    %79 = tpu.matmul %27, %76, %cst_38 {dimension_numbers = #tpu.dot_dimension_numbers<[1], [0], [0], [1], [0, 0, 1, 1], [], []>} : vector<3x16xbf16>, vector<16x16xbf16>, vector<3x16xf32> -> vector<3x16xf32>
    %80 = arith.addf %78, %79 : vector<3x16xf32>
    %81 = vector.broadcast %30 : vector<16x1xi32> to vector<16x16xi32>
    %82 = vector.broadcast %11 : vector<1x16xi32> to vector<16x16xi32>
    %83 = arith.cmpi eq, %81, %82 : vector<16x16xi32>
    %84 = arith.extui %83 : vector<16x16xi1> to vector<16x16xi32>
    %85 = arith.sitofp %84 : vector<16x16xi32> to vector<16x16xf32>
    %86 = arith.truncf %85 : vector<16x16xf32> to vector<16x16xbf16>
    %cst_39 = arith.constant dense<0.000000e+00> : vector<3x16xf32>
    %87 = tpu.matmul %25, %86, %cst_39 {dimension_numbers = #tpu.dot_dimension_numbers<[1], [0], [0], [1], [0, 0, 1, 1], [], []>} : vector<3x16xbf16>, vector<16x16xbf16>, vector<3x16xf32> -> vector<3x16xf32>
    %88 = arith.addf %21, %87 : vector<3x16xf32>
    %cst_40 = arith.constant dense<0.000000e+00> : vector<3x16xf32>
    %89 = tpu.matmul %27, %86, %cst_40 {dimension_numbers = #tpu.dot_dimension_numbers<[1], [0], [0], [1], [0, 0, 1, 1], [], []>} : vector<3x16xbf16>, vector<16x16xbf16>, vector<3x16xf32> -> vector<3x16xf32>
    %90 = arith.addf %88, %89 : vector<3x16xf32>
    %91 = vector.broadcast %30 : vector<16x1xi32> to vector<16x16xi32>
    %92 = vector.broadcast %13 : vector<1x16xi32> to vector<16x16xi32>
    %93 = arith.cmpi eq, %91, %92 : vector<16x16xi32>
    %94 = arith.extui %93 : vector<16x16xi1> to vector<16x16xi32>
    %95 = arith.sitofp %94 : vector<16x16xi32> to vector<16x16xf32>
    %96 = arith.truncf %95 : vector<16x16xf32> to vector<16x16xbf16>
    %cst_41 = arith.constant dense<0.000000e+00> : vector<3x16xf32>
    %97 = tpu.matmul %25, %96, %cst_41 {dimension_numbers = #tpu.dot_dimension_numbers<[1], [0], [0], [1], [0, 0, 1, 1], [], []>} : vector<3x16xbf16>, vector<16x16xbf16>, vector<3x16xf32> -> vector<3x16xf32>
    %98 = arith.addf %22, %97 : vector<3x16xf32>
    %cst_42 = arith.constant dense<0.000000e+00> : vector<3x16xf32>
    %99 = tpu.matmul %27, %96, %cst_42 {dimension_numbers = #tpu.dot_dimension_numbers<[1], [0], [0], [1], [0, 0, 1, 1], [], []>} : vector<3x16xbf16>, vector<16x16xbf16>, vector<3x16xf32> -> vector<3x16xf32>
    %100 = arith.addf %98, %99 : vector<3x16xf32>
    %101 = vector.broadcast %30 : vector<16x1xi32> to vector<16x16xi32>
    %102 = vector.broadcast %15 : vector<1x16xi32> to vector<16x16xi32>
    %103 = arith.cmpi eq, %101, %102 : vector<16x16xi32>
    %104 = arith.extui %103 : vector<16x16xi1> to vector<16x16xi32>
    %105 = arith.sitofp %104 : vector<16x16xi32> to vector<16x16xf32>
    %106 = arith.truncf %105 : vector<16x16xf32> to vector<16x16xbf16>
    %cst_43 = arith.constant dense<0.000000e+00> : vector<3x16xf32>
    %107 = tpu.matmul %25, %106, %cst_43 {dimension_numbers = #tpu.dot_dimension_numbers<[1], [0], [0], [1], [0, 0, 1, 1], [], []>} : vector<3x16xbf16>, vector<16x16xbf16>, vector<3x16xf32> -> vector<3x16xf32>
    %108 = arith.addf %23, %107 : vector<3x16xf32>
    %cst_44 = arith.constant dense<0.000000e+00> : vector<3x16xf32>
    %109 = tpu.matmul %27, %106, %cst_44 {dimension_numbers = #tpu.dot_dimension_numbers<[1], [0], [0], [1], [0, 0, 1, 1], [], []>} : vector<3x16xbf16>, vector<16x16xbf16>, vector<3x16xf32> -> vector<3x16xf32>
    %110 = arith.addf %108, %109 : vector<3x16xf32>
    %c0_45 = arith.constant 0 : index
    %c0_46 = arith.constant 0 : index
    %c0_47 = arith.constant 0 : index
    %111 = vector.load %arg4[%c0_45, %c0_46, %c0_47] : memref<1x3x16xf32, #tpu.memory_space<vmem>>, vector<1x3x16xf32>
    %112 = vector.shape_cast %111 : vector<1x3x16xf32> to vector<3x16xf32>
    %113 = arith.subf %40, %112 : vector<3x16xf32>
    %cst_48 = arith.constant 0.000000e+00 : f32
    %114 = vector.broadcast %cst_48 : f32 to vector<1x16xf32>
    %115 = vector.extract_strided_slice %113 {offsets = [0, 0], sizes = [1, 16], strides = [1, 1]} : vector<3x16xf32> to vector<1x16xf32>
    %116 = arith.mulf %115, %115 : vector<1x16xf32>
    %117 = arith.addf %114, %116 : vector<1x16xf32>
    %118 = vector.extract_strided_slice %113 {offsets = [1, 0], sizes = [1, 16], strides = [1, 1]} : vector<3x16xf32> to vector<1x16xf32>
    %119 = arith.mulf %118, %118 : vector<1x16xf32>
    %120 = arith.addf %117, %119 : vector<1x16xf32>
    %121 = vector.extract_strided_slice %113 {offsets = [2, 0], sizes = [1, 16], strides = [1, 1]} : vector<3x16xf32> to vector<1x16xf32>
    %122 = arith.mulf %121, %121 : vector<1x16xf32>
    %123 = arith.addf %120, %122 : vector<1x16xf32>
    %124 = math.sqrt %123 : vector<1x16xf32>
    %125 = arith.subf %50, %112 : vector<3x16xf32>
    %cst_49 = arith.constant 0.000000e+00 : f32
    %126 = vector.broadcast %cst_49 : f32 to vector<1x16xf32>
    %127 = vector.extract_strided_slice %125 {offsets = [0, 0], sizes = [1, 16], strides = [1, 1]} : vector<3x16xf32> to vector<1x16xf32>
    %128 = arith.mulf %127, %127 : vector<1x16xf32>
    %129 = arith.addf %126, %128 : vector<1x16xf32>
    %130 = vector.extract_strided_slice %125 {offsets = [1, 0], sizes = [1, 16], strides = [1, 1]} : vector<3x16xf32> to vector<1x16xf32>
    %131 = arith.mulf %130, %130 : vector<1x16xf32>
    %132 = arith.addf %129, %131 : vector<1x16xf32>
    %133 = vector.extract_strided_slice %125 {offsets = [2, 0], sizes = [1, 16], strides = [1, 1]} : vector<3x16xf32> to vector<1x16xf32>
    %134 = arith.mulf %133, %133 : vector<1x16xf32>
    %135 = arith.addf %132, %134 : vector<1x16xf32>
    %136 = math.sqrt %135 : vector<1x16xf32>
    %137 = arith.subf %60, %112 : vector<3x16xf32>
    %cst_50 = arith.constant 0.000000e+00 : f32
    %138 = vector.broadcast %cst_50 : f32 to vector<1x16xf32>
    %139 = vector.extract_strided_slice %137 {offsets = [0, 0], sizes = [1, 16], strides = [1, 1]} : vector<3x16xf32> to vector<1x16xf32>
    %140 = arith.mulf %139, %139 : vector<1x16xf32>
    %141 = arith.addf %138, %140 : vector<1x16xf32>
    %142 = vector.extract_strided_slice %137 {offsets = [1, 0], sizes = [1, 16], strides = [1, 1]} : vector<3x16xf32> to vector<1x16xf32>
    %143 = arith.mulf %142, %142 : vector<1x16xf32>
    %144 = arith.addf %141, %143 : vector<1x16xf32>
    %145 = vector.extract_strided_slice %137 {offsets = [2, 0], sizes = [1, 16], strides = [1, 1]} : vector<3x16xf32> to vector<1x16xf32>
    %146 = arith.mulf %145, %145 : vector<1x16xf32>
    %147 = arith.addf %144, %146 : vector<1x16xf32>
    %148 = math.sqrt %147 : vector<1x16xf32>
    %149 = arith.subf %70, %112 : vector<3x16xf32>
    %cst_51 = arith.constant 0.000000e+00 : f32
    %150 = vector.broadcast %cst_51 : f32 to vector<1x16xf32>
    %151 = vector.extract_strided_slice %149 {offsets = [0, 0], sizes = [1, 16], strides = [1, 1]} : vector<3x16xf32> to vector<1x16xf32>
    %152 = arith.mulf %151, %151 : vector<1x16xf32>
    %153 = arith.addf %150, %152 : vector<1x16xf32>
    %154 = vector.extract_strided_slice %149 {offsets = [1, 0], sizes = [1, 16], strides = [1, 1]} : vector<3x16xf32> to vector<1x16xf32>
    %155 = arith.mulf %154, %154 : vector<1x16xf32>
    %156 = arith.addf %153, %155 : vector<1x16xf32>
    %157 = vector.extract_strided_slice %149 {offsets = [2, 0], sizes = [1, 16], strides = [1, 1]} : vector<3x16xf32> to vector<1x16xf32>
    %158 = arith.mulf %157, %157 : vector<1x16xf32>
    %159 = arith.addf %156, %158 : vector<1x16xf32>
    %160 = math.sqrt %159 : vector<1x16xf32>
    %161 = arith.subf %80, %112 : vector<3x16xf32>
    %cst_52 = arith.constant 0.000000e+00 : f32
    %162 = vector.broadcast %cst_52 : f32 to vector<1x16xf32>
    %163 = vector.extract_strided_slice %161 {offsets = [0, 0], sizes = [1, 16], strides = [1, 1]} : vector<3x16xf32> to vector<1x16xf32>
    %164 = arith.mulf %163, %163 : vector<1x16xf32>
    %165 = arith.addf %162, %164 : vector<1x16xf32>
    %166 = vector.extract_strided_slice %161 {offsets = [1, 0], sizes = [1, 16], strides = [1, 1]} : vector<3x16xf32> to vector<1x16xf32>
    %167 = arith.mulf %166, %166 : vector<1x16xf32>
    %168 = arith.addf %165, %167 : vector<1x16xf32>
    %169 = vector.extract_strided_slice %161 {offsets = [2, 0], sizes = [1, 16], strides = [1, 1]} : vector<3x16xf32> to vector<1x16xf32>
    %170 = arith.mulf %169, %169 : vector<1x16xf32>
    %171 = arith.addf %168, %170 : vector<1x16xf32>
    %172 = math.sqrt %171 : vector<1x16xf32>
    %173 = arith.subf %90, %112 : vector<3x16xf32>
    %cst_53 = arith.constant 0.000000e+00 : f32
    %174 = vector.broadcast %cst_53 : f32 to vector<1x16xf32>
    %175 = vector.extract_strided_slice %173 {offsets = [0, 0], sizes = [1, 16], strides = [1, 1]} : vector<3x16xf32> to vector<1x16xf32>
    %176 = arith.mulf %175, %175 : vector<1x16xf32>
    %177 = arith.addf %174, %176 : vector<1x16xf32>
    %178 = vector.extract_strided_slice %173 {offsets = [1, 0], sizes = [1, 16], strides = [1, 1]} : vector<3x16xf32> to vector<1x16xf32>
    %179 = arith.mulf %178, %178 : vector<1x16xf32>
    %180 = arith.addf %177, %179 : vector<1x16xf32>
    %181 = vector.extract_strided_slice %173 {offsets = [2, 0], sizes = [1, 16], strides = [1, 1]} : vector<3x16xf32> to vector<1x16xf32>
    %182 = arith.mulf %181, %181 : vector<1x16xf32>
    %183 = arith.addf %180, %182 : vector<1x16xf32>
    %184 = math.sqrt %183 : vector<1x16xf32>
    %185 = arith.subf %100, %112 : vector<3x16xf32>
    %cst_54 = arith.constant 0.000000e+00 : f32
    %186 = vector.broadcast %cst_54 : f32 to vector<1x16xf32>
    %187 = vector.extract_strided_slice %185 {offsets = [0, 0], sizes = [1, 16], strides = [1, 1]} : vector<3x16xf32> to vector<1x16xf32>
    %188 = arith.mulf %187, %187 : vector<1x16xf32>
    %189 = arith.addf %186, %188 : vector<1x16xf32>
    %190 = vector.extract_strided_slice %185 {offsets = [1, 0], sizes = [1, 16], strides = [1, 1]} : vector<3x16xf32> to vector<1x16xf32>
    %191 = arith.mulf %190, %190 : vector<1x16xf32>
    %192 = arith.addf %189, %191 : vector<1x16xf32>
    %193 = vector.extract_strided_slice %185 {offsets = [2, 0], sizes = [1, 16], strides = [1, 1]} : vector<3x16xf32> to vector<1x16xf32>
    %194 = arith.mulf %193, %193 : vector<1x16xf32>
    %195 = arith.addf %192, %194 : vector<1x16xf32>
    %196 = math.sqrt %195 : vector<1x16xf32>
    %197 = arith.subf %110, %112 : vector<3x16xf32>
    %cst_55 = arith.constant 0.000000e+00 : f32
    %198 = vector.broadcast %cst_55 : f32 to vector<1x16xf32>
    %199 = vector.extract_strided_slice %197 {offsets = [0, 0], sizes = [1, 16], strides = [1, 1]} : vector<3x16xf32> to vector<1x16xf32>
    %200 = arith.mulf %199, %199 : vector<1x16xf32>
    %201 = arith.addf %198, %200 : vector<1x16xf32>
    %202 = vector.extract_strided_slice %197 {offsets = [1, 0], sizes = [1, 16], strides = [1, 1]} : vector<3x16xf32> to vector<1x16xf32>
    %203 = arith.mulf %202, %202 : vector<1x16xf32>
    %204 = arith.addf %201, %203 : vector<1x16xf32>
    %205 = vector.extract_strided_slice %197 {offsets = [2, 0], sizes = [1, 16], strides = [1, 1]} : vector<3x16xf32> to vector<1x16xf32>
    %206 = arith.mulf %205, %205 : vector<1x16xf32>
    %207 = arith.addf %204, %206 : vector<1x16xf32>
    %208 = math.sqrt %207 : vector<1x16xf32>
    %209 = tpu.concatenate %124, %136, %148, %160, %172, %184, %196, %208 in 0 : vector<1x16xf32>, vector<1x16xf32>, vector<1x16xf32>, vector<1x16xf32>, vector<1x16xf32>, vector<1x16xf32>, vector<1x16xf32>, vector<1x16xf32> -> vector<8x16xf32>
    %c0_56 = arith.constant 0 : index
    %c0_57 = arith.constant 0 : index
    %c0_58 = arith.constant 0 : index
    %210 = vector.load %arg6[%c0_56, %c0_57, %c0_58] : memref<1x8x16xi32, #tpu.memory_space<vmem>>, vector<1x8x16xi32>
    %211 = vector.shape_cast %210 : vector<1x8x16xi32> to vector<8x16xi32>
    %c0_59 = arith.constant 0 : index
    %212 = memref.load %arg10[%c0_59] : memref<3xi32, #tpu.memory_space<smem>>
    %213 = vector.broadcast %212 : i32 to vector<8x16xi32>
    %214 = arith.cmpi eq, %211, %213 : vector<8x16xi32>
    %215 = arith.extui %214 : vector<8x16xi1> to vector<8x16xi32>
    %216 = arith.sitofp %215 : vector<8x16xi32> to vector<8x16xf32>
    %c1_60 = arith.constant 1 : index
    %217 = memref.load %arg10[%c1_60] : memref<3xi32, #tpu.memory_space<smem>>
    %218 = vector.broadcast %217 : i32 to vector<8x16xi32>
    %219 = arith.cmpi eq, %211, %218 : vector<8x16xi32>
    %220 = arith.extui %219 : vector<8x16xi1> to vector<8x16xi32>
    %221 = arith.sitofp %220 : vector<8x16xi32> to vector<8x16xf32>
    %c2_61 = arith.constant 2 : index
    %222 = memref.load %arg10[%c2_61] : memref<3xi32, #tpu.memory_space<smem>>
    %223 = vector.broadcast %222 : i32 to vector<8x16xi32>
    %224 = arith.cmpi eq, %211, %223 : vector<8x16xi32>
    %225 = arith.extui %224 : vector<8x16xi1> to vector<8x16xi32>
    %226 = arith.sitofp %225 : vector<8x16xi32> to vector<8x16xf32>
    %c0_62 = arith.constant 0 : index
    %227 = memref.load %arg7[%c0_62] : memref<4xf32, #tpu.memory_space<smem>>
    %c0_63 = arith.constant 0 : index
    %228 = memref.load %arg8[%c0_63] : memref<4xf32, #tpu.memory_space<smem>>
    %c0_64 = arith.constant 0 : index
    %229 = memref.load %arg9[%c0_64] : memref<4xf32, #tpu.memory_space<smem>>
    %cst_65 = arith.constant 0.000000e+00 : f32
    %230 = arith.subf %cst_65, %229 : f32
    %231 = vector.broadcast %228 : f32 to vector<8x16xf32>
    %232 = arith.subf %209, %231 : vector<8x16xf32>
    %233 = arith.mulf %232, %232 : vector<8x16xf32>
    %234 = vector.broadcast %230 : f32 to vector<8x16xf32>
    %235 = arith.mulf %234, %233 : vector<8x16xf32>
    %236 = math.exp %235 : vector<8x16xf32>
    %237 = vector.broadcast %227 : f32 to vector<8x16xf32>
    %238 = arith.cmpf ole, %209, %237 : vector<8x16xf32>
    %cst_66 = arith.constant 3.14159274 : f32
    %239 = vector.broadcast %cst_66 : f32 to vector<8x16xf32>
    %240 = arith.mulf %239, %209 : vector<8x16xf32>
    %241 = vector.broadcast %227 : f32 to vector<8x16xf32>
    %242 = arith.divf %240, %241 : vector<8x16xf32>
    %243 = math.cos %242 : vector<8x16xf32>
    %cst_67 = arith.constant 1.000000e+00 : f32
    %244 = vector.broadcast %cst_67 : f32 to vector<8x16xf32>
    %245 = arith.addf %243, %244 : vector<8x16xf32>
    %cst_68 = arith.constant 5.000000e-01 : f32
    %246 = vector.broadcast %cst_68 : f32 to vector<8x16xf32>
    %247 = arith.mulf %246, %245 : vector<8x16xf32>
    %cst_69 = arith.constant 0.000000e+00 : f32
    %248 = vector.broadcast %cst_69 : f32 to vector<8x16xf32>
    %249 = arith.select %238, %247, %248 : vector<8x16xi1>, vector<8x16xf32>
    %250 = arith.mulf %236, %249 : vector<8x16xf32>
    %251 = arith.mulf %216, %250 : vector<8x16xf32>
    %cst_70 = arith.constant dense<0.000000e+00> : vector<16xf32>
    %252 = vector.multi_reduction <add>, %251, %cst_70 [0] : vector<8x16xf32> to vector<16xf32>
    %253 = vector.shape_cast %252 : vector<16xf32> to vector<1x16xf32>
    %c0_71 = arith.constant 0 : index
    %c0_72 = arith.constant 0 : index
    %c0_73 = arith.constant 0 : index
    %254 = vector.load %arg11[%c0_71, %c0_72, %c0_73] : memref<1x12x16xf32, #tpu.memory_space<vmem>>, vector<1x1x16xf32>
    %255 = vector.shape_cast %254 : vector<1x1x16xf32> to vector<1x16xf32>
    %256 = vector.shape_cast %253 : vector<1x16xf32> to vector<1x1x16xf32>
    tpu.vector_store %arg11[%c0_71, %c0_72, %c0_73], %256 {strides = array<i32>} : memref<1x12x16xf32, #tpu.memory_space<vmem>>, vector<1x1x16xf32>,
    %257 = arith.mulf %221, %250 : vector<8x16xf32>
    %cst_74 = arith.constant dense<0.000000e+00> : vector<16xf32>
    %258 = vector.multi_reduction <add>, %257, %cst_74 [0] : vector<8x16xf32> to vector<16xf32>
    %259 = vector.shape_cast %258 : vector<16xf32> to vector<1x16xf32>
    %c0_75 = arith.constant 0 : index
    %c4_76 = arith.constant 4 : index
    %c0_77 = arith.constant 0 : index
    %260 = vector.load %arg11[%c0_75, %c4_76, %c0_77] : memref<1x12x16xf32, #tpu.memory_space<vmem>>, vector<1x1x16xf32>
    %261 = vector.shape_cast %260 : vector<1x1x16xf32> to vector<1x16xf32>
    %262 = vector.shape_cast %259 : vector<1x16xf32> to vector<1x1x16xf32>
    tpu.vector_store %arg11[%c0_75, %c4_76, %c0_77], %262 {strides = array<i32>} : memref<1x12x16xf32, #tpu.memory_space<vmem>>, vector<1x1x16xf32>,
    %263 = arith.mulf %226, %250 : vector<8x16xf32>
    %cst_78 = arith.constant dense<0.000000e+00> : vector<16xf32>
    %264 = vector.multi_reduction <add>, %263, %cst_78 [0] : vector<8x16xf32> to vector<16xf32>
    %265 = vector.shape_cast %264 : vector<16xf32> to vector<1x16xf32>
    %c0_79 = arith.constant 0 : index
    %c8 = arith.constant 8 : index
    %c0_80 = arith.constant 0 : index
    %266 = vector.load %arg11[%c0_79, %c8, %c0_80] : memref<1x12x16xf32, #tpu.memory_space<vmem>>, vector<1x1x16xf32>
    %267 = vector.shape_cast %266 : vector<1x1x16xf32> to vector<1x16xf32>
    %268 = vector.shape_cast %265 : vector<1x16xf32> to vector<1x1x16xf32>
    tpu.vector_store %arg11[%c0_79, %c8, %c0_80], %268 {strides = array<i32>} : memref<1x12x16xf32, #tpu.memory_space<vmem>>, vector<1x1x16xf32>,
    %c1_81 = arith.constant 1 : index
    %269 = memref.load %arg7[%c1_81] : memref<4xf32, #tpu.memory_space<smem>>
    %c1_82 = arith.constant 1 : index
    %270 = memref.load %arg8[%c1_82] : memref<4xf32, #tpu.memory_space<smem>>
    %c1_83 = arith.constant 1 : index
    %271 = memref.load %arg9[%c1_83] : memref<4xf32, #tpu.memory_space<smem>>
    %cst_84 = arith.constant 0.000000e+00 : f32
    %272 = arith.subf %cst_84, %271 : f32
    %273 = vector.broadcast %270 : f32 to vector<8x16xf32>
    %274 = arith.subf %209, %273 : vector<8x16xf32>
    %275 = arith.mulf %274, %274 : vector<8x16xf32>
    %276 = vector.broadcast %272 : f32 to vector<8x16xf32>
    %277 = arith.mulf %276, %275 : vector<8x16xf32>
    %278 = math.exp %277 : vector<8x16xf32>
    %279 = vector.broadcast %269 : f32 to vector<8x16xf32>
    %280 = arith.cmpf ole, %209, %279 : vector<8x16xf32>
    %cst_85 = arith.constant 3.14159274 : f32
    %281 = vector.broadcast %cst_85 : f32 to vector<8x16xf32>
    %282 = arith.mulf %281, %209 : vector<8x16xf32>
    %283 = vector.broadcast %269 : f32 to vector<8x16xf32>
    %284 = arith.divf %282, %283 : vector<8x16xf32>
    %285 = math.cos %284 : vector<8x16xf32>
    %cst_86 = arith.constant 1.000000e+00 : f32
    %286 = vector.broadcast %cst_86 : f32 to vector<8x16xf32>
    %287 = arith.addf %285, %286 : vector<8x16xf32>
    %cst_87 = arith.constant 5.000000e-01 : f32
    %288 = vector.broadcast %cst_87 : f32 to vector<8x16xf32>
    %289 = arith.mulf %288, %287 : vector<8x16xf32>
    %cst_88 = arith.constant 0.000000e+00 : f32
    %290 = vector.broadcast %cst_88 : f32 to vector<8x16xf32>
    %291 = arith.select %280, %289, %290 : vector<8x16xi1>, vector<8x16xf32>
    %292 = arith.mulf %278, %291 : vector<8x16xf32>
    %293 = arith.mulf %216, %292 : vector<8x16xf32>
    %cst_89 = arith.constant dense<0.000000e+00> : vector<16xf32>
    %294 = vector.multi_reduction <add>, %293, %cst_89 [0] : vector<8x16xf32> to vector<16xf32>
    %295 = vector.shape_cast %294 : vector<16xf32> to vector<1x16xf32>
    %c0_90 = arith.constant 0 : index
    %c1_91 = arith.constant 1 : index
    %c0_92 = arith.constant 0 : index
    %296 = vector.load %arg11[%c0_90, %c1_91, %c0_92] : memref<1x12x16xf32, #tpu.memory_space<vmem>>, vector<1x1x16xf32>
    %297 = vector.shape_cast %296 : vector<1x1x16xf32> to vector<1x16xf32>
    %298 = vector.shape_cast %295 : vector<1x16xf32> to vector<1x1x16xf32>
    tpu.vector_store %arg11[%c0_90, %c1_91, %c0_92], %298 {strides = array<i32>} : memref<1x12x16xf32, #tpu.memory_space<vmem>>, vector<1x1x16xf32>,
    %299 = arith.mulf %221, %292 : vector<8x16xf32>
    %cst_93 = arith.constant dense<0.000000e+00> : vector<16xf32>
    %300 = vector.multi_reduction <add>, %299, %cst_93 [0] : vector<8x16xf32> to vector<16xf32>
    %301 = vector.shape_cast %300 : vector<16xf32> to vector<1x16xf32>
    %c0_94 = arith.constant 0 : index
    %c5_95 = arith.constant 5 : index
    %c0_96 = arith.constant 0 : index
    %302 = vector.load %arg11[%c0_94, %c5_95, %c0_96] : memref<1x12x16xf32, #tpu.memory_space<vmem>>, vector<1x1x16xf32>
    %303 = vector.shape_cast %302 : vector<1x1x16xf32> to vector<1x16xf32>
    %304 = vector.shape_cast %301 : vector<1x16xf32> to vector<1x1x16xf32>
    tpu.vector_store %arg11[%c0_94, %c5_95, %c0_96], %304 {strides = array<i32>} : memref<1x12x16xf32, #tpu.memory_space<vmem>>, vector<1x1x16xf32>,
    %305 = arith.mulf %226, %292 : vector<8x16xf32>
    %cst_97 = arith.constant dense<0.000000e+00> : vector<16xf32>
    %306 = vector.multi_reduction <add>, %305, %cst_97 [0] : vector<8x16xf32> to vector<16xf32>
    %307 = vector.shape_cast %306 : vector<16xf32> to vector<1x16xf32>
    %c0_98 = arith.constant 0 : index
    %c9 = arith.constant 9 : index
    %c0_99 = arith.constant 0 : index
    %308 = vector.load %arg11[%c0_98, %c9, %c0_99] : memref<1x12x16xf32, #tpu.memory_space<vmem>>, vector<1x1x16xf32>
    %309 = vector.shape_cast %308 : vector<1x1x16xf32> to vector<1x16xf32>
    %310 = vector.shape_cast %307 : vector<1x16xf32> to vector<1x1x16xf32>
    tpu.vector_store %arg11[%c0_98, %c9, %c0_99], %310 {strides = array<i32>} : memref<1x12x16xf32, #tpu.memory_space<vmem>>, vector<1x1x16xf32>,
    %c2_100 = arith.constant 2 : index
    %311 = memref.load %arg7[%c2_100] : memref<4xf32, #tpu.memory_space<smem>>
    %c2_101 = arith.constant 2 : index
    %312 = memref.load %arg8[%c2_101] : memref<4xf32, #tpu.memory_space<smem>>
    %c2_102 = arith.constant 2 : index
    %313 = memref.load %arg9[%c2_102] : memref<4xf32, #tpu.memory_space<smem>>
    %cst_103 = arith.constant 0.000000e+00 : f32
    %314 = arith.subf %cst_103, %313 : f32
    %315 = vector.broadcast %312 : f32 to vector<8x16xf32>
    %316 = arith.subf %209, %315 : vector<8x16xf32>
    %317 = arith.mulf %316, %316 : vector<8x16xf32>
    %318 = vector.broadcast %314 : f32 to vector<8x16xf32>
    %319 = arith.mulf %318, %317 : vector<8x16xf32>
    %320 = math.exp %319 : vector<8x16xf32>
    %321 = vector.broadcast %311 : f32 to vector<8x16xf32>
    %322 = arith.cmpf ole, %209, %321 : vector<8x16xf32>
    %cst_104 = arith.constant 3.14159274 : f32
    %323 = vector.broadcast %cst_104 : f32 to vector<8x16xf32>
    %324 = arith.mulf %323, %209 : vector<8x16xf32>
    %325 = vector.broadcast %311 : f32 to vector<8x16xf32>
    %326 = arith.divf %324, %325 : vector<8x16xf32>
    %327 = math.cos %326 : vector<8x16xf32>
    %cst_105 = arith.constant 1.000000e+00 : f32
    %328 = vector.broadcast %cst_105 : f32 to vector<8x16xf32>
    %329 = arith.addf %327, %328 : vector<8x16xf32>
    %cst_106 = arith.constant 5.000000e-01 : f32
    %330 = vector.broadcast %cst_106 : f32 to vector<8x16xf32>
    %331 = arith.mulf %330, %329 : vector<8x16xf32>
    %cst_107 = arith.constant 0.000000e+00 : f32
    %332 = vector.broadcast %cst_107 : f32 to vector<8x16xf32>
    %333 = arith.select %322, %331, %332 : vector<8x16xi1>, vector<8x16xf32>
    %334 = arith.mulf %320, %333 : vector<8x16xf32>
    %335 = arith.mulf %216, %334 : vector<8x16xf32>
    %cst_108 = arith.constant dense<0.000000e+00> : vector<16xf32>
    %336 = vector.multi_reduction <add>, %335, %cst_108 [0] : vector<8x16xf32> to vector<16xf32>
    %337 = vector.shape_cast %336 : vector<16xf32> to vector<1x16xf32>
    %c0_109 = arith.constant 0 : index
    %c2_110 = arith.constant 2 : index
    %c0_111 = arith.constant 0 : index
    %338 = vector.load %arg11[%c0_109, %c2_110, %c0_111] : memref<1x12x16xf32, #tpu.memory_space<vmem>>, vector<1x1x16xf32>
    %339 = vector.shape_cast %338 : vector<1x1x16xf32> to vector<1x16xf32>
    %340 = vector.shape_cast %337 : vector<1x16xf32> to vector<1x1x16xf32>
    tpu.vector_store %arg11[%c0_109, %c2_110, %c0_111], %340 {strides = array<i32>} : memref<1x12x16xf32, #tpu.memory_space<vmem>>, vector<1x1x16xf32>,
    %341 = arith.mulf %221, %334 : vector<8x16xf32>
    %cst_112 = arith.constant dense<0.000000e+00> : vector<16xf32>
    %342 = vector.multi_reduction <add>, %341, %cst_112 [0] : vector<8x16xf32> to vector<16xf32>
    %343 = vector.shape_cast %342 : vector<16xf32> to vector<1x16xf32>
    %c0_113 = arith.constant 0 : index
    %c6_114 = arith.constant 6 : index
    %c0_115 = arith.constant 0 : index
    %344 = vector.load %arg11[%c0_113, %c6_114, %c0_115] : memref<1x12x16xf32, #tpu.memory_space<vmem>>, vector<1x1x16xf32>
    %345 = vector.shape_cast %344 : vector<1x1x16xf32> to vector<1x16xf32>
    %346 = vector.shape_cast %343 : vector<1x16xf32> to vector<1x1x16xf32>
    tpu.vector_store %arg11[%c0_113, %c6_114, %c0_115], %346 {strides = array<i32>} : memref<1x12x16xf32, #tpu.memory_space<vmem>>, vector<1x1x16xf32>,
    %347 = arith.mulf %226, %334 : vector<8x16xf32>
    %cst_116 = arith.constant dense<0.000000e+00> : vector<16xf32>
    %348 = vector.multi_reduction <add>, %347, %cst_116 [0] : vector<8x16xf32> to vector<16xf32>
    %349 = vector.shape_cast %348 : vector<16xf32> to vector<1x16xf32>
    %c0_117 = arith.constant 0 : index
    %c10 = arith.constant 10 : index
    %c0_118 = arith.constant 0 : index
    %350 = vector.load %arg11[%c0_117, %c10, %c0_118] : memref<1x12x16xf32, #tpu.memory_space<vmem>>, vector<1x1x16xf32>
    %351 = vector.shape_cast %350 : vector<1x1x16xf32> to vector<1x16xf32>
    %352 = vector.shape_cast %349 : vector<1x16xf32> to vector<1x1x16xf32>
    tpu.vector_store %arg11[%c0_117, %c10, %c0_118], %352 {strides = array<i32>} : memref<1x12x16xf32, #tpu.memory_space<vmem>>, vector<1x1x16xf32>,
    %c3_119 = arith.constant 3 : index
    %353 = memref.load %arg7[%c3_119] : memref<4xf32, #tpu.memory_space<smem>>
    %c3_120 = arith.constant 3 : index
    %354 = memref.load %arg8[%c3_120] : memref<4xf32, #tpu.memory_space<smem>>
    %c3_121 = arith.constant 3 : index
    %355 = memref.load %arg9[%c3_121] : memref<4xf32, #tpu.memory_space<smem>>
    %cst_122 = arith.constant 0.000000e+00 : f32
    %356 = arith.subf %cst_122, %355 : f32
    %357 = vector.broadcast %354 : f32 to vector<8x16xf32>
    %358 = arith.subf %209, %357 : vector<8x16xf32>
    %359 = arith.mulf %358, %358 : vector<8x16xf32>
    %360 = vector.broadcast %356 : f32 to vector<8x16xf32>
    %361 = arith.mulf %360, %359 : vector<8x16xf32>
    %362 = math.exp %361 : vector<8x16xf32>
    %363 = vector.broadcast %353 : f32 to vector<8x16xf32>
    %364 = arith.cmpf ole, %209, %363 : vector<8x16xf32>
    %cst_123 = arith.constant 3.14159274 : f32
    %365 = vector.broadcast %cst_123 : f32 to vector<8x16xf32>
    %366 = arith.mulf %365, %209 : vector<8x16xf32>
    %367 = vector.broadcast %353 : f32 to vector<8x16xf32>
    %368 = arith.divf %366, %367 : vector<8x16xf32>
    %369 = math.cos %368 : vector<8x16xf32>
    %cst_124 = arith.constant 1.000000e+00 : f32
    %370 = vector.broadcast %cst_124 : f32 to vector<8x16xf32>
    %371 = arith.addf %369, %370 : vector<8x16xf32>
    %cst_125 = arith.constant 5.000000e-01 : f32
    %372 = vector.broadcast %cst_125 : f32 to vector<8x16xf32>
    %373 = arith.mulf %372, %371 : vector<8x16xf32>
    %cst_126 = arith.constant 0.000000e+00 : f32
    %374 = vector.broadcast %cst_126 : f32 to vector<8x16xf32>
    %375 = arith.select %364, %373, %374 : vector<8x16xi1>, vector<8x16xf32>
    %376 = arith.mulf %362, %375 : vector<8x16xf32>
    %377 = arith.mulf %216, %376 : vector<8x16xf32>
    %cst_127 = arith.constant dense<0.000000e+00> : vector<16xf32>
    %378 = vector.multi_reduction <add>, %377, %cst_127 [0] : vector<8x16xf32> to vector<16xf32>
    %379 = vector.shape_cast %378 : vector<16xf32> to vector<1x16xf32>
    %c0_128 = arith.constant 0 : index
    %c3_129 = arith.constant 3 : index
    %c0_130 = arith.constant 0 : index
    %380 = vector.load %arg11[%c0_128, %c3_129, %c0_130] : memref<1x12x16xf32, #tpu.memory_space<vmem>>, vector<1x1x16xf32>
    %381 = vector.shape_cast %380 : vector<1x1x16xf32> to vector<1x16xf32>
    %382 = vector.shape_cast %379 : vector<1x16xf32> to vector<1x1x16xf32>
    tpu.vector_store %arg11[%c0_128, %c3_129, %c0_130], %382 {strides = array<i32>} : memref<1x12x16xf32, #tpu.memory_space<vmem>>, vector<1x1x16xf32>,
    %383 = arith.mulf %221, %376 : vector<8x16xf32>
    %cst_131 = arith.constant dense<0.000000e+00> : vector<16xf32>
    %384 = vector.multi_reduction <add>, %383, %cst_131 [0] : vector<8x16xf32> to vector<16xf32>
    %385 = vector.shape_cast %384 : vector<16xf32> to vector<1x16xf32>
    %c0_132 = arith.constant 0 : index
    %c7_133 = arith.constant 7 : index
    %c0_134 = arith.constant 0 : index
    %386 = vector.load %arg11[%c0_132, %c7_133, %c0_134] : memref<1x12x16xf32, #tpu.memory_space<vmem>>, vector<1x1x16xf32>
    %387 = vector.shape_cast %386 : vector<1x1x16xf32> to vector<1x16xf32>
    %388 = vector.shape_cast %385 : vector<1x16xf32> to vector<1x1x16xf32>
    tpu.vector_store %arg11[%c0_132, %c7_133, %c0_134], %388 {strides = array<i32>} : memref<1x12x16xf32, #tpu.memory_space<vmem>>, vector<1x1x16xf32>,
    %389 = arith.mulf %226, %376 : vector<8x16xf32>
    %cst_135 = arith.constant dense<0.000000e+00> : vector<16xf32>
    %390 = vector.multi_reduction <add>, %389, %cst_135 [0] : vector<8x16xf32> to vector<16xf32>
    %391 = vector.shape_cast %390 : vector<16xf32> to vector<1x16xf32>
    %c0_136 = arith.constant 0 : index
    %c11 = arith.constant 11 : index
    %c0_137 = arith.constant 0 : index
    %392 = vector.load %arg11[%c0_136, %c11, %c0_137] : memref<1x12x16xf32, #tpu.memory_space<vmem>>, vector<1x1x16xf32>
    %393 = vector.shape_cast %392 : vector<1x1x16xf32> to vector<1x16xf32>
    %394 = vector.shape_cast %391 : vector<1x16xf32> to vector<1x1x16xf32>
    tpu.vector_store %arg11[%c0_136, %c11, %c0_137], %394 {strides = array<i32>} : memref<1x12x16xf32, #tpu.memory_space<vmem>>, vector<1x1x16xf32>,
    return
  }
  func.func @transform_0(%arg0: i32, %arg1: i32) -> (i32, i32, i32) {
    %c0_i32 = arith.constant 0 : i32
    %c0_i32_0 = arith.constant 0 : i32
    %c0_i32_1 = arith.constant 0 : i32
    return %arg0, %c0_i32, %c0_i32_0 : i32, i32, i32
  }
  func.func @transform_1(%arg0: i32, %arg1: i32) -> (i32, i32, i32) {
    %c0_i32 = arith.constant 0 : i32
    %c0_i32_0 = arith.constant 0 : i32
    %c0_i32_1 = arith.constant 0 : i32
    return %arg0, %c0_i32, %c0_i32_0 : i32, i32, i32
  }
  func.func @transform_2(%arg0: i32, %arg1: i32) -> (i32, i32, i32) {
    %c0_i32 = arith.constant 0 : i32
    %c0_i32_0 = arith.constant 0 : i32
    return %arg0, %c0_i32, %arg1 : i32, i32, i32
  }
  func.func @transform_3(%arg0: i32, %arg1: i32) -> (i32, i32, i32) {
    %c0_i32 = arith.constant 0 : i32
    %c0_i32_0 = arith.constant 0 : i32
    return %arg0, %c0_i32, %arg1 : i32, i32, i32
  }
  func.func @transform_4(%arg0: i32, %arg1: i32) -> (i32, i32, i32) {
    %c0_i32 = arith.constant 0 : i32
    %c0_i32_0 = arith.constant 0 : i32
    return %arg0, %c0_i32, %arg1 : i32, i32, i32
  }
  func.func @transform_5(%arg0: i32, %arg1: i32) -> i32 {
    %c0_i32 = arith.constant 0 : i32
    %c0_i32_0 = arith.constant 0 : i32
    return %c0_i32 : i32
  }
  func.func @transform_6(%arg0: i32, %arg1: i32) -> i32 {
    %c0_i32 = arith.constant 0 : i32
    %c0_i32_0 = arith.constant 0 : i32
    return %c0_i32 : i32
  }
  func.func @transform_7(%arg0: i32, %arg1: i32) -> i32 {
    %c0_i32 = arith.constant 0 : i32
    %c0_i32_0 = arith.constant 0 : i32
    return %c0_i32 : i32
  }
  func.func @transform_8(%arg0: i32, %arg1: i32) -> i32 {
    %c0_i32 = arith.constant 0 : i32
    %c0_i32_0 = arith.constant 0 : i32
    return %c0_i32 : i32
  }
  func.func @transform_9(%arg0: i32, %arg1: i32) -> (i32, i32, i32) {
    %c0_i32 = arith.constant 0 : i32
    %c0_i32_0 = arith.constant 0 : i32
    return %arg0, %c0_i32, %arg1 : i32, i32, i32
  }
}

</mosaic_0001>

<llo_original>
// kernel: tpu_custom_call.1
$region0: #{tpu_custom_call.1}
  #allocation0 [shape = 'u32[]', space=smem, size = 0x4, offset = 0x4, fixed_abs, tag = 'smem constant byte address 0x4 - core index']
  #allocation1 [shape = 'u32[144,128]{1,0:T(1,128)}', space=vmem, size = 0x12000, scoped, tag = 'internal scratch']
  %s0 = inlined_call_operand.vmem [shape: bf16[2,3,16], index: 0, kind: input, shape index: {}]
  %s1 = inlined_call_operand.vmem [shape: bf16[2,3,16], index: 1, kind: input, shape index: {}]
  %s2 = inlined_call_operand.vmem [shape: f32[2,3,16], index: 2, kind: input, shape index: {}]
  %s3 = inlined_call_operand.vmem [shape: s32[2,8,16], index: 3, kind: input, shape index: {}]
  %s4 = inlined_call_operand.vmem [shape: s32[2,8,16], index: 4, kind: input, shape index: {}]
  %s5 = inlined_call_operand.vmem [shape: f32[4], index: 5, kind: input, shape index: {}]
  %s6 = inlined_call_operand.vmem [shape: f32[4], index: 6, kind: input, shape index: {}]
  %s7 = inlined_call_operand.vmem [shape: f32[4], index: 7, kind: input, shape index: {}]
  %s8 = inlined_call_operand.vmem [shape: s32[3], index: 8, kind: input, shape index: {}]
  %s9 = inlined_call_operand.vmem [shape: f32[2,12,16], index: 9, kind: output, shape index: {}]
  %s10 = sld [smem:[#allocation0]]
  $region85: #{tpu_custom_call.1} parent=0
    _
  %s12 = ssub.s32 1, %s10
  %s13 = scalar_select 0, %s12, %s10
  $region1: #{tpu_custom_call.1} parent=0
    #allocation2 [shape = 'u8[512]{0}', space=smem, size = 0x200, scoped, tag = 'input window, operand 5, single buffered']
    #allocation3 [shape = 's32[2]{0}', space=sflag, size = 0x8, scoped, tag = 'scoped memory for tpu_custom_call.1']
    #allocation4 [shape = 'u8[512]{0}', space=smem, size = 0x200, scoped, tag = 'input window, operand 6, single buffered']
    #allocation5 [shape = 's32[1]{0}', space=sflag, size = 0x4, scoped, tag = 'scoped memory for tpu_custom_call.1']
    #allocation6 [shape = 'u8[512]{0}', space=smem, size = 0x200, scoped, tag = 'input window, operand 7, single buffered']
    #allocation7 [shape = 'u8[512]{0}', space=smem, size = 0x200, scoped, tag = 'input window, operand 8, single buffered']
    #allocation8 [shape = 's32[1]{0}', space=sflag, size = 0x4, scoped, tag = 'scoped memory for tpu_custom_call.1']
    %14 = vsyncpa [#allocation3], 0
    %15 = vsyncpa [#allocation5], 0
    %16 = vsyncpa [#allocation8], 0
    loop: start=0, step=1, limit=4
    $region2: #{tpu_custom_call.1} parent=1 // loop_pre_header
      _
    $region3: #{tpu_custom_call.1} parent=1 // loop_header
      %s18 = sphi 0, %s22
      %p19 = scmp.ge.s32.totalorder %s18, 4
      %s25 = sphi 0, %s37
      %s26 = sphi 0, %s33
      %s27 = sphi 0, %s25
      %s28 = sphi 0, %s26
      %s29 = sphi 0, %s27
      %s30 = sphi 0, %s28
      %s40 = sphi 0, %s42
      %s43 = sphi 0, %s40
      %s44 = sphi 0, %s43
      %s60 = sphi 0, %s44
      %s66 = sphi 0, %s68
      %s69 = sphi 0, %s66
      %s70 = sphi 0, %s69
      %s86 = sphi 0, %s70
      %s94 = sphi 0, %s96
      %s97 = sphi 0, %s94
      %s98 = sphi 0, %s97
      %s114 = sphi 0, %s98
      %s122 = sphi 0, %s124
      %s125 = sphi 0, %s122
      %s126 = sphi 0, %s125
      %s142 = sphi 0, %s126
      %s150 = sphi 0, %s152
      %s153 = sphi 0, %s150
      %s154 = sphi 0, %s153
      %s170 = sphi 0, %s154
      %s174 = sphi 0, %s174
      %s176 = sphi 0, %s174
      %s177 = sphi 0, %s176
      %s191 = sphi 0, %s177
      %s195 = sphi 0, %s195
      %s197 = sphi 0, %s195
      %s198 = sphi 0, %s197
      %s212 = sphi 0, %s198
      %s216 = sphi 0, %s216
      %s218 = sphi 0, %s216
      %s219 = sphi 0, %s218
      %s233 = sphi 0, %s219
      %s237 = sphi 0, %s237
      %s239 = sphi 0, %s237
      %s240 = sphi 0, %s239
      %s254 = sphi 0, %s240
      %s262 = sphi 0, %s264
      %s265 = sphi 0, %s262
      %s266 = sphi 0, %s265
      %s282 = sphi 0, %s266
    $region4: #{tpu_custom_call.1} parent=1 // loop_header_branch
      %21 = sbr.rel (%p19) target = $region8
    $region5: #{tpu_custom_call.1} parent=1 // loop_body
      %s23 = ssub.s32 %s18, 1
      %s24 = ssub.s32 %s18, 2
      %s31 = sadd.s32 1, %s26
      %p32 = scmp.ge.s32.totalorder %s31, 1
      %s33 = scalar_select %p32, 0, %s31
      %s34 = sadd.s32 1, %s25
      %s35 = scalar_select %p32, %s34, %s25
      %p36 = scmp.ge.s32.totalorder %s35, 2
      %s37 = scalar_select %p36, 0, %s35
      %s38 = ssub.s32 %s25, %s37
      %p39 = scmp.eq.s32.totalorder %s38, 0
      %s41 = sadd.s32 %s40, 1
      %s42 = scalar_select %p39, %s40, %s41
      %p45 = pneg %p39
      %p46 = scmp.eq.s32.totalorder %s18, 1
      %p47 = por %p45, %p46
      %p48 = scmp.ne.s32.totalorder %s40, %s43
      %p49 = scmp.eq.s32.totalorder %s18, 0
      %p50 = por %p48, %p49
      %p51 = scmp.ne.s32.totalorder %s40, %s43
      %p52 = scmp.eq.s32.totalorder %s23, 1
      %p53 = por %p51, %p52
      %p54 = scmp.ne.s32.totalorder %s43, %s44
      %p55 = scmp.eq.s32.totalorder %s23, 0
      %p56 = por %p54, %p55
      %p57 = scmp.ne.s32.totalorder %s43, %s44
      %p58 = scmp.eq.s32.totalorder %s24, 1
      %p59 = por %p57, %p58
      %p61 = scmp.ne.s32.totalorder %s44, %s60
      %p62 = scmp.eq.s32.totalorder %s24, 0
      %p63 = por %p61, %p62
      %s64 = ssub.s32 %s25, %s37
      %p65 = scmp.eq.s32.totalorder %s64, 0
      %s67 = sadd.s32 %s66, 1
      %s68 = scalar_select %p65, %s66, %s67
      %p71 = pneg %p65
      %p72 = scmp.eq.s32.totalorder %s18, 1
      %p73 = por %p71, %p72
      %p74 = scmp.ne.s32.totalorder %s66, %s69
      %p75 = scmp.eq.s32.totalorder %s18, 0
      %p76 = por %p74, %p75
      %p77 = scmp.ne.s32.totalorder %s66, %s69
      %p78 = scmp.eq.s32.totalorder %s23, 1
      %p79 = por %p77, %p78
      %p80 = scmp.ne.s32.totalorder %s69, %s70
      %p81 = scmp.eq.s32.totalorder %s23, 0
      %p82 = por %p80, %p81
      %p83 = scmp.ne.s32.totalorder %s69, %s70
      %p84 = scmp.eq.s32.totalorder %s24, 1
      %p85 = por %p83, %p84
      %p87 = scmp.ne.s32.totalorder %s70, %s86
      %p88 = scmp.eq.s32.totalorder %s24, 0
      %p89 = por %p87, %p88
      %s90 = ssub.s32 %s25, %s37
      %s91 = ssub.s32 %s26, %s33
      %s92 = sor.u32 %s90, %s91
      %p93 = scmp.eq.s32.totalorder %s92, 0
      %s95 = sadd.s32 %s94, 1
      %s96 = scalar_select %p93, %s94, %s95
      %p99 = pneg %p93
      %p100 = scmp.eq.s32.totalorder %s18, 1
      %p101 = por %p99, %p100
      %p102 = scmp.ne.s32.totalorder %s94, %s97
      %p103 = scmp.eq.s32.totalorder %s18, 0
      %p104 = por %p102, %p103
      %p105 = scmp.ne.s32.totalorder %s94, %s97
      %p106 = scmp.eq.s32.totalorder %s23, 1
      %p107 = por %p105, %p106
      %p108 = scmp.ne.s32.totalorder %s97, %s98
      %p109 = scmp.eq.s32.totalorder %s23, 0
      %p110 = por %p108, %p109
      %p111 = scmp.ne.s32.totalorder %s97, %s98
      %p112 = scmp.eq.s32.totalorder %s24, 1
      %p113 = por %p111, %p112
      %p115 = scmp.ne.s32.totalorder %s98, %s114
      %p116 = scmp.eq.s32.totalorder %s24, 0
      %p117 = por %p115, %p116
      %s118 = ssub.s32 %s25, %s37
      %s119 = ssub.s32 %s26, %s33
      %s120 = sor.u32 %s118, %s119
      %p121 = scmp.eq.s32.totalorder %s120, 0
      %s123 = sadd.s32 %s122, 1
      %s124 = scalar_select %p121, %s122, %s123
      %p127 = pneg %p121
      %p128 = scmp.eq.s32.totalorder %s18, 1
      %p129 = por %p127, %p128
      %p130 = scmp.ne.s32.totalorder %s122, %s125
      %p131 = scmp.eq.s32.totalorder %s18, 0
      %p132 = por %p130, %p131
      %p133 = scmp.ne.s32.totalorder %s122, %s125
      %p134 = scmp.eq.s32.totalorder %s23, 1
      %p135 = por %p133, %p134
      %p136 = scmp.ne.s32.totalorder %s125, %s126
      %p137 = scmp.eq.s32.totalorder %s23, 0
      %p138 = por %p136, %p137
      %p139 = scmp.ne.s32.totalorder %s125, %s126
      %p140 = scmp.eq.s32.totalorder %s24, 1
      %p141 = por %p139, %p140
      %p143 = scmp.ne.s32.totalorder %s126, %s142
      %p144 = scmp.eq.s32.totalorder %s24, 0
      %p145 = por %p143, %p144
      %s146 = ssub.s32 %s25, %s37
      %s147 = ssub.s32 %s26, %s33
      %s148 = sor.u32 %s146, %s147
      %p149 = scmp.eq.s32.totalorder %s148, 0
      %s151 = sadd.s32 %s150, 1
      %s152 = scalar_select %p149, %s150, %s151
      %p155 = pneg %p149
      %p156 = scmp.eq.s32.totalorder %s18, 1
      %p157 = por %p155, %p156
      %p158 = scmp.ne.s32.totalorder %s150, %s153
      %p159 = scmp.eq.s32.totalorder %s18, 0
      %p160 = por %p158, %p159
      %p161 = scmp.ne.s32.totalorder %s150, %s153
      %p162 = scmp.eq.s32.totalorder %s23, 1
      %p163 = por %p161, %p162
      %p164 = scmp.ne.s32.totalorder %s153, %s154
      %p165 = scmp.eq.s32.totalorder %s23, 0
      %p166 = por %p164, %p165
      %p167 = scmp.ne.s32.totalorder %s153, %s154
      %p168 = scmp.eq.s32.totalorder %s24, 1
      %p169 = por %p167, %p168
      %p171 = scmp.ne.s32.totalorder %s154, %s170
      %p172 = scmp.eq.s32.totalorder %s24, 0
      %p173 = por %p171, %p172
      %s175 = sadd.s32 %s174, 1
      %p178 = scmp.eq.s32.totalorder %s18, 1
      %p179 = scmp.ne.s32.totalorder %s174, %s176
      %p180 = scmp.eq.s32.totalorder %s18, 0
      %p181 = por %p179, %p180
      %p182 = scmp.ne.s32.totalorder %s174, %s176
      %p183 = scmp.eq.s32.totalorder %s23, 1
      %p184 = por %p182, %p183
      %p185 = scmp.ne.s32.totalorder %s176, %s177
      %p186 = scmp.eq.s32.totalorder %s23, 0
      %p187 = por %p185, %p186
      %p188 = scmp.ne.s32.totalorder %s176, %s177
      %p189 = scmp.eq.s32.totalorder %s24, 1
      %p190 = por %p188, %p189
      %p192 = scmp.ne.s32.totalorder %s177, %s191
      %p193 = scmp.eq.s32.totalorder %s24, 0
      %p194 = por %p192, %p193
      %s196 = sadd.s32 %s195, 1
      %p199 = scmp.eq.s32.totalorder %s18, 1
      %p200 = scmp.ne.s32.totalorder %s195, %s197
      %p201 = scmp.eq.s32.totalorder %s18, 0
      %p202 = por %p200, %p201
      %p203 = scmp.ne.s32.totalorder %s195, %s197
      %p204 = scmp.eq.s32.totalorder %s23, 1
      %p205 = por %p203, %p204
      %p206 = scmp.ne.s32.totalorder %s197, %s198
      %p207 = scmp.eq.s32.totalorder %s23, 0
      %p208 = por %p206, %p207
      %p209 = scmp.ne.s32.totalorder %s197, %s198
      %p210 = scmp.eq.s32.totalorder %s24, 1
      %p211 = por %p209, %p210
      %p213 = scmp.ne.s32.totalorder %s198, %s212
      %p214 = scmp.eq.s32.totalorder %s24, 0
      %p215 = por %p213, %p214
      %s217 = sadd.s32 %s216, 1
      %p220 = scmp.eq.s32.totalorder %s18, 1
      %p221 = scmp.ne.s32.totalorder %s216, %s218
      %p222 = scmp.eq.s32.totalorder %s18, 0
      %p223 = por %p221, %p222
      %p224 = scmp.ne.s32.totalorder %s216, %s218
      %p225 = scmp.eq.s32.totalorder %s23, 1
      %p226 = por %p224, %p225
      %p227 = scmp.ne.s32.totalorder %s218, %s219
      %p228 = scmp.eq.s32.totalorder %s23, 0
      %p229 = por %p227, %p228
      %p230 = scmp.ne.s32.totalorder %s218, %s219
      %p231 = scmp.eq.s32.totalorder %s24, 1
      %p232 = por %p230, %p231
      %p234 = scmp.ne.s32.totalorder %s219, %s233
      %p235 = scmp.eq.s32.totalorder %s24, 0
      %p236 = por %p234, %p235
      %s238 = sadd.s32 %s237, 1
      %p241 = scmp.eq.s32.totalorder %s18, 1
      %p242 = scmp.ne.s32.totalorder %s237, %s239
      %p243 = scmp.eq.s32.totalorder %s18, 0
      %p244 = por %p242, %p243
      %p245 = scmp.ne.s32.totalorder %s237, %s239
      %p246 = scmp.eq.s32.totalorder %s23, 1
      %p247 = por %p245, %p246
      %p248 = scmp.ne.s32.totalorder %s239, %s240
      %p249 = scmp.eq.s32.totalorder %s23, 0
      %p250 = por %p248, %p249
      %p251 = scmp.ne.s32.totalorder %s239, %s240
      %p252 = scmp.eq.s32.totalorder %s24, 1
      %p253 = por %p251, %p252
      %p255 = scmp.ne.s32.totalorder %s240, %s254
      %p256 = scmp.eq.s32.totalorder %s24, 0
      %p257 = por %p255, %p256
      %s258 = ssub.s32 %s25, %s37
      %s259 = ssub.s32 %s26, %s33
      %s260 = sor.u32 %s258, %s259
      %p261 = scmp.eq.s32.totalorder %s260, 0
      %s263 = sadd.s32 %s262, 1
      %s264 = scalar_select %p261, %s262, %s263
      %p267 = pneg %p261
      %p268 = scmp.eq.s32.totalorder %s18, 1
      %p269 = por %p267, %p268
      %p270 = scmp.ne.s32.totalorder %s262, %s265
      %p271 = scmp.eq.s32.totalorder %s18, 0
      %p272 = por %p270, %p271
      %p273 = scmp.ne.s32.totalorder %s262, %s265
      %p274 = scmp.eq.s32.totalorder %s23, 1
      %p275 = por %p273, %p274
      %p276 = scmp.ne.s32.totalorder %s265, %s266
      %p277 = scmp.eq.s32.totalorder %s23, 0
      %p278 = por %p276, %p277
      %p279 = scmp.ne.s32.totalorder %s265, %s266
      %p280 = scmp.eq.s32.totalorder %s24, 1
      %p281 = por %p279, %p280
      %p283 = scmp.ne.s32.totalorder %s266, %s282
      %p284 = scmp.eq.s32.totalorder %s24, 0
      %p285 = por %p283, %p284
      %p286 = scmp.le.s32.totalorder 1, %s18
      %p287 = scmp.lt.s32.totalorder %s18, 3
      %p288 = pnand %p286, %p287
      %p289 = pneg %p288
      // Predicated region
      $region9: #{tpu_custom_call.1} parent=5 // pred_check
        _
      $region10: #{tpu_custom_call.1} parent=5 // pred_check_branch
        %291 = sbr.rel (%p288) target = $region12
      $region11: #{tpu_custom_call.1} parent=5 // pred_region
        %s292 = ssub.s32 %s18, 1
        // Predicated region
        $region13: #{tpu_custom_call.1} parent=11 // pred_check
          %p293 = pneg %p187
        $region14: #{tpu_custom_call.1} parent=11 // pred_check_branch
          %295 = sbr.rel (%p293) target = $region16
        $region15: #{tpu_custom_call.1} parent=11 // pred_region
          %s297 = ssub.s32 16, 16
          %298 = vsyncadd [#allocation3], %s297
          %s300 = sshll.u32 %s5, 4
          %s301 = int_to_ptr.vmem [resolvable:$true] %s300
          %303 = dma.vmem_to_smem %s301, 16, [#allocation2], [#allocation3]
        $region16: #{tpu_custom_call.1} parent=11 // pred_fallthru
          _
        // Predicated region
        $region17: #{tpu_custom_call.1} parent=11 // pred_check
          %p304 = pneg %p208
        $region18: #{tpu_custom_call.1} parent=11 // pred_check_branch
          %306 = sbr.rel (%p304) target = $region20
        $region19: #{tpu_custom_call.1} parent=11 // pred_region
          %s308 = ssub.s32 16, 16
          %309 = vsyncadd [#allocation5], %s308
          %s311 = sshll.u32 %s6, 4
          %s312 = int_to_ptr.vmem [resolvable:$true] %s311
          %314 = dma.vmem_to_smem %s312, 16, [#allocation4], [#allocation5]
        $region20: #{tpu_custom_call.1} parent=11 // pred_fallthru
          _
        // Predicated region
        $region21: #{tpu_custom_call.1} parent=11 // pred_check
          %p315 = pneg %p229
        $region22: #{tpu_custom_call.1} parent=11 // pred_check_branch
          %317 = sbr.rel (%p315) target = $region24
        $region23: #{tpu_custom_call.1} parent=11 // pred_region
          %s319 = ssub.s32 16, 16
          %320 = vsyncadd [#allocation5], %s319
          %s322 = sshll.u32 %s7, 4
          %s323 = int_to_ptr.vmem [resolvable:$true] %s322
          %325 = dma.vmem_to_smem %s323, 16, [#allocation6], [#allocation5]
        $region24: #{tpu_custom_call.1} parent=11 // pred_fallthru
          _
        // Predicated region
        $region25: #{tpu_custom_call.1} parent=11 // pred_check
          %p326 = pneg %p250
        $region26: #{tpu_custom_call.1} parent=11 // pred_check_branch
          %328 = sbr.rel (%p326) target = $region28
        $region27: #{tpu_custom_call.1} parent=11 // pred_region
          %s330 = ssub.s32 16, 16
          %331 = vsyncadd [#allocation8], %s330
          %s333 = sshll.u32 %s8, 4
          %s334 = int_to_ptr.vmem [resolvable:$true] %s333
          %336 = dma.vmem_to_smem %s334, 16, [#allocation7], [#allocation8]
        $region28: #{tpu_custom_call.1} parent=11 // pred_fallthru
          _
      $region12: #{tpu_custom_call.1} parent=5 // pred_fallthru
        _
      %p337 = scmp.lt.s32.totalorder %s18, 2
      // Predicated region
      $region29: #{tpu_custom_call.1} parent=5 // pred_check
        %p338 = pneg %p337
      $region30: #{tpu_custom_call.1} parent=5 // pred_check_branch
        %340 = sbr.rel (%p338) target = $region32
      $region31: #{tpu_custom_call.1} parent=5 // pred_region
        // Predicated region
        $region33: #{tpu_custom_call.1} parent=31 // pred_check
          %p341 = pneg %p50
        $region34: #{tpu_custom_call.1} parent=31 // pred_check_branch
          %343 = sbr.rel (%p341) target = $region36
        $region35: #{tpu_custom_call.1} parent=31 // pred_region
          %p344 = scmp.lt.s32.totalorder %s25, 1
          %s345 = scalar_select %p344, %s25, 1
          %s346 = smul.addr %s345, 2
          %s347 = scalar_lea.vmem %s0, %s346
        $region36: #{tpu_custom_call.1} parent=31 // pred_fallthru
          _
        // Predicated region
        $region37: #{tpu_custom_call.1} parent=31 // pred_check
          %p348 = pneg %p76
        $region38: #{tpu_custom_call.1} parent=31 // pred_check_branch
          %350 = sbr.rel (%p348) target = $region40
        $region39: #{tpu_custom_call.1} parent=31 // pred_region
          %p351 = scmp.lt.s32.totalorder %s25, 1
          %s352 = scalar_select %p351, %s25, 1
          %s353 = smul.addr %s352, 2
          %s354 = scalar_lea.vmem %s1, %s353
        $region40: #{tpu_custom_call.1} parent=31 // pred_fallthru
          _
        // Predicated region
        $region41: #{tpu_custom_call.1} parent=31 // pred_check
          %p355 = pneg %p104
        $region42: #{tpu_custom_call.1} parent=31 // pred_check_branch
          %357 = sbr.rel (%p355) target = $region44
        $region43: #{tpu_custom_call.1} parent=31 // pred_region
          %p358 = scmp.lt.s32.totalorder %s25, 1
          %s359 = scalar_select %p358, %s25, 1
          %p360 = scmp.lt.s32.totalorder %s26, 0
          %s361 = scalar_select %p360, %s26, 0
          %s362 = sadd.s32 %s361, %s359
          %s363 = smul.addr %s362, 4
          %s364 = scalar_lea.vmem %s2, %s363
        $region44: #{tpu_custom_call.1} parent=31 // pred_fallthru
          _
        // Predicated region
        $region45: #{tpu_custom_call.1} parent=31 // pred_check
          %p365 = pneg %p132
        $region46: #{tpu_custom_call.1} parent=31 // pred_check_branch
          %367 = sbr.rel (%p365) target = $region48
        $region47: #{tpu_custom_call.1} parent=31 // pred_region
          %p368 = scmp.lt.s32.totalorder %s25, 1
          %s369 = scalar_select %p368, %s25, 1
          %p370 = scmp.lt.s32.totalorder %s26, 0
          %s371 = scalar_select %p370, %s26, 0
          %s372 = sadd.s32 %s371, %s369
          %s373 = smul.addr %s372, 8
          %s374 = scalar_lea.vmem %s3, %s373
        $region48: #{tpu_custom_call.1} parent=31 // pred_fallthru
          _
        // Predicated region
        $region49: #{tpu_custom_call.1} parent=31 // pred_check
          %p375 = pneg %p160
        $region50: #{tpu_custom_call.1} parent=31 // pred_check_branch
          %377 = sbr.rel (%p375) target = $region52
        $region51: #{tpu_custom_call.1} parent=31 // pred_region
          %p378 = scmp.lt.s32.totalorder %s25, 1
          %s379 = scalar_select %p378, %s25, 1
          %p380 = scmp.lt.s32.totalorder %s26, 0
          %s381 = scalar_select %p380, %s26, 0
          %s382 = sadd.s32 %s381, %s379
          %s383 = smul.addr %s382, 8
          %s384 = scalar_lea.vmem %s4, %s383
        $region52: #{tpu_custom_call.1} parent=31 // pred_fallthru
          _
      $region32: #{tpu_custom_call.1} parent=5 // pred_fallthru
        _
      %p385 = scmp.le.s32.totalorder 1, %s18
      %p386 = scmp.lt.s32.totalorder %s18, 3
      %p387 = pnand %p385, %p386
      %p388 = pneg %p387
      // Predicated region
      $region53: #{tpu_custom_call.1} parent=5 // pred_check
        _
      $region54: #{tpu_custom_call.1} parent=5 // pred_check_branch
        %390 = sbr.rel (%p387) target = $region56
      $region55: #{tpu_custom_call.1} parent=5 // pred_region
        %s391 = ssub.s32 %s18, 1
        // Predicated region
        $region57: #{tpu_custom_call.1} parent=55 // pred_check
          %p392 = pneg %p187
        $region58: #{tpu_custom_call.1} parent=55 // pred_check_branch
          %394 = sbr.rel (%p392) target = $region60
        $region59: #{tpu_custom_call.1} parent=55 // pred_region
          %395 = dma.done [#allocation3], 16
        $region60: #{tpu_custom_call.1} parent=55 // pred_fallthru
          _
        // Predicated region
        $region61: #{tpu_custom_call.1} parent=55 // pred_check
          %p396 = pneg %p208
        $region62: #{tpu_custom_call.1} parent=55 // pred_check_branch
          %398 = sbr.rel (%p396) target = $region64
        $region63: #{tpu_custom_call.1} parent=55 // pred_region
          %399 = dma.done [#allocation5], 16
        $region64: #{tpu_custom_call.1} parent=55 // pred_fallthru
          _
        // Predicated region
        $region65: #{tpu_custom_call.1} parent=55 // pred_check
          %p400 = pneg %p229
        $region66: #{tpu_custom_call.1} parent=55 // pred_check_branch
          %402 = sbr.rel (%p400) target = $region68
        $region67: #{tpu_custom_call.1} parent=55 // pred_region
          %403 = dma.done [#allocation5], 16
        $region68: #{tpu_custom_call.1} parent=55 // pred_fallthru
          _
        // Predicated region
        $region69: #{tpu_custom_call.1} parent=55 // pred_check
          %p404 = pneg %p250
        $region70: #{tpu_custom_call.1} parent=55 // pred_check_branch
          %406 = sbr.rel (%p404) target = $region72
        $region71: #{tpu_custom_call.1} parent=55 // pred_region
          %407 = dma.done [#allocation8], 16
        $region72: #{tpu_custom_call.1} parent=55 // pred_fallthru
          _
        %408 = sfence
        %p409 = scmp.lt.s32.totalorder %s27, 1
        %s410 = scalar_select %p409, %s27, 1
        %s411 = smul.addr %s410, 2
        %s412 = scalar_lea.vmem %s0, %s411
        %p413 = pneg %p56
        %p414 = pneg %p53
        %p415 = scmp.lt.s32.totalorder %s27, 1
        %s416 = scalar_select %p415, %s27, 1
        %s417 = smul.addr %s416, 2
        %s418 = scalar_lea.vmem %s1, %s417
        %p419 = pneg %p82
        %p420 = pneg %p79
        %p421 = scmp.lt.s32.totalorder %s27, 1
        %s422 = scalar_select %p421, %s27, 1
        %p423 = scmp.lt.s32.totalorder %s28, 0
        %s424 = scalar_select %p423, %s28, 0
        %s425 = sadd.s32 %s424, %s422
        %s426 = smul.addr %s425, 4
        %s427 = scalar_lea.vmem %s2, %s426
        %p428 = pneg %p110
        %p429 = pneg %p107
        %p430 = scmp.lt.s32.totalorder %s27, 1
        %s431 = scalar_select %p430, %s27, 1
        %p432 = scmp.lt.s32.totalorder %s28, 0
        %s433 = scalar_select %p432, %s28, 0
        %s434 = sadd.s32 %s433, %s431
        %s435 = smul.addr %s434, 8
        %s436 = scalar_lea.vmem %s3, %s435
        %p437 = pneg %p138
        %p438 = pneg %p135
        %p439 = scmp.lt.s32.totalorder %s27, 1
        %s440 = scalar_select %p439, %s27, 1
        %p441 = scmp.lt.s32.totalorder %s28, 0
        %s442 = scalar_select %p441, %s28, 0
        %s443 = sadd.s32 %s442, %s440
        %s444 = smul.addr %s443, 8
        %s445 = scalar_lea.vmem %s4, %s444
        %p446 = pneg %p166
        %p447 = pneg %p163
        %p448 = pneg %p187
        %p449 = pneg %p184
        %p450 = pneg %p208
        %p451 = pneg %p205
        %p452 = pneg %p229
        %p453 = pneg %p226
        %p454 = pneg %p250
        %p455 = pneg %p247
        %p456 = pneg %p278
        %p457 = pneg %p275
        %p458 = scmp.lt.s32.totalorder %s27, 1
        %s459 = scalar_select %p458, %s27, 1
        %p460 = scmp.lt.s32.totalorder %s28, 0
        %s461 = scalar_select %p460, %s28, 0
        %s462 = smul.addr %s459, 2
        %s463 = sadd.s32 %s461, %s462
        %s464 = smul.addr %s463, 8
        %s465 = scalar_lea.vmem %s9, %s464
        %p466 = scmp.lt.s32.totalorder %s27, 1
        %s467 = scalar_select %p466, %s27, 1
        %s468 = smul.addr %s467, 2
        %s469 = scalar_lea.vmem %s0, %s468
        %p470 = scmp.lt.s32.totalorder %s27, 1
        %s471 = scalar_select %p470, %s27, 1
        %s472 = smul.addr %s471, 2
        %s473 = scalar_lea.vmem %s1, %s472
        %p474 = scmp.lt.s32.totalorder %s27, 1
        %s475 = scalar_select %p474, %s27, 1
        %p476 = scmp.lt.s32.totalorder %s28, 0
        %s477 = scalar_select %p476, %s28, 0
        %s478 = sadd.s32 %s477, %s475
        %s479 = smul.addr %s478, 4
        %s480 = scalar_lea.vmem %s2, %s479
        %p481 = scmp.lt.s32.totalorder %s27, 1
        %s482 = scalar_select %p481, %s27, 1
        %p483 = scmp.lt.s32.totalorder %s28, 0
        %s484 = scalar_select %p483, %s28, 0
        %s485 = sadd.s32 %s484, %s482
        %s486 = smul.addr %s485, 8
        %s487 = scalar_lea.vmem %s3, %s486
        %p488 = scmp.lt.s32.totalorder %s27, 1
        %s489 = scalar_select %p488, %s27, 1
        %p490 = scmp.lt.s32.totalorder %s28, 0
        %s491 = scalar_select %p490, %s28, 0
        %s492 = sadd.s32 %s491, %s489
        %s493 = smul.addr %s492, 8
        %s494 = scalar_lea.vmem %s4, %s493
        %p495 = scmp.lt.s32.totalorder %s27, 1
        %s496 = scalar_select %p495, %s27, 1
        %p497 = scmp.lt.s32.totalorder %s28, 0
        %s498 = scalar_select %p497, %s28, 0
        %s499 = smul.addr %s496, 2
        %s500 = sadd.s32 %s498, %s499
        %s501 = smul.addr %s500, 8
        %s502 = scalar_lea.vmem %s9, %s501
        %v504 = vld [vmem:[%s487] sm:$0x1]
        %v505 = vld [vmem:[%s487 + $0x1] sm:$0x1]
        %v506 = vld [vmem:[%s487 + $0x2] sm:$0x1]
        %v507 = vld [vmem:[%s487 + $0x3] sm:$0x1]
        %v508 = vld [vmem:[%s487 + $0x4] sm:$0x1]
        %v509 = vld [vmem:[%s487 + $0x5] sm:$0x1]
        %v510 = vld [vmem:[%s487 + $0x6] sm:$0x1]
        %v511 = vld [vmem:[%s487 + $0x7] sm:$0x1]
        %v512 = vld [vmem:[%s469] sm:$0x3]
        %v513 = vld [vmem:[%s473] sm:$0x3]
        %v514 = vlaneseq
        %v515 = vshrl.u32 %v514, 7
        %v516 = vadd.s32 %v515, 8
        %v517 = vlaneseq
        %v518 = vshrl.u32 %v517, 7
        %v519 = vsub.s32 0, %v518
        %v520 = vrot.slane %v504, %v519
        %vm521 = vcmp.eq.s32.totalorder %v515, %v520
        %vm522 = vcmp.eq.s32.totalorder %v516, %v520
        %v523 = vsel %vm521, 1, 0
        %v524 = vsel %vm522, 1, 0
        %v525 = vcvt.s32.f32 %v523
        %v526 = vcvt.s32.f32 %v524
        %v527 = vpack.c.bf16 %v526, %v525
        %vm528 = vcmask 130048
        %v530 = vsel %vm528, %v513, 0
        %532 = vmatprep.subr.bf16.mxu0 0
        %533 = vmatpush1.bf16.msra.mxu0 %v527
        %534 = vmatprep.subr.bf16.mxu0 0
        %535 = vmatpush1.bf16.msra.mxu0 0
        %536 = vmatprep.subr.bf16.mxu0 0
        %537 = vmatpush1.bf16.msra.mxu0 0
        %538 = vmatprep.subr.bf16.mxu0 0
        %539 = vmatpush1.bf16.msra.mxu0 0
        %540 = vmatprep.subr.bf16.mxu0 0
        %541 = vmatpush1.bf16.msra.mxu0 0
        %542 = vmatprep.subr.bf16.mxu0 0
        %543 = vmatpush1.bf16.msra.mxu0 0
        %544 = vmatprep.subr.bf16.mxu0 0
        %545 = vmatpush1.bf16.msra.mxu0 0
        %546 = vmatprep.subr.bf16.mxu0 0
        %547 = vmatpush1.bf16.msra.mxu0 0
        %548 = vmatprep.subr.bf16.mxu0 0
        %549 = vmatpush1.bf16.msra.mxu0 0
        %550 = vmatprep.subr.bf16.mxu0 0
        %551 = vmatpush1.bf16.msra.mxu0 0
        %552 = vmatprep.subr.bf16.mxu0 0
        %553 = vmatpush1.bf16.msra.mxu0 0
        %554 = vmatprep.subr.bf16.mxu0 0
        %555 = vmatpush1.bf16.msra.mxu0 0
        %556 = vmatprep.subr.bf16.mxu0 0
        %557 = vmatpush1.bf16.msra.mxu0 0
        %558 = vmatprep.subr.bf16.mxu0 0
        %559 = vmatpush1.bf16.msra.mxu0 0
        %560 = vmatprep.subr.bf16.mxu0 0
        %561 = vmatpush1.bf16.msra.mxu0 0
        %562 = vmatprep.subr.bf16.mxu0 0
        %563 = vmatpush1.bf16.msra.mxu0 0
        %564 = vmatprep.mubr.bf16.mxu0 0
        %565 = vmatmul.mubr.bf16.gmra.mrb[0].mxu0 %v530
        %v566 = vpop.f32.mrb[0].mxu0
        %v567 = vadd.f32 0.0, %v566
        %v568 = vpop.f32.mrb[0].mxu0
        %v569 = vpop.f32.mrb[0].mxu0
        %v570 = vpop.f32.mrb[0].mxu0
        %571 = vdwg.mxu0
        %v573 = vsel %vm528, %v512, 0
        %575 = vmatprep.subr.bf16.mxu0 0
        %576 = vmatpush1.bf16.msra.mxu0 %v527
        %577 = vmatprep.subr.bf16.mxu0 0
        %578 = vmatpush1.bf16.msra.mxu0 0
        %579 = vmatprep.subr.bf16.mxu0 0
        %580 = vmatpush1.bf16.msra.mxu0 0
        %581 = vmatprep.subr.bf16.mxu0 0
        %582 = vmatpush1.bf16.msra.mxu0 0
        %583 = vmatprep.subr.bf16.mxu0 0
        %584 = vmatpush1.bf16.msra.mxu0 0
        %585 = vmatprep.subr.bf16.mxu0 0
        %586 = vmatpush1.bf16.msra.mxu0 0
        %587 = vmatprep.subr.bf16.mxu0 0
        %588 = vmatpush1.bf16.msra.mxu0 0
        %589 = vmatprep.subr.bf16.mxu0 0
        %590 = vmatpush1.bf16.msra.mxu0 0
        %591 = vmatprep.subr.bf16.mxu0 0
        %592 = vmatpush1.bf16.msra.mxu0 0
        %593 = vmatprep.subr.bf16.mxu0 0
        %594 = vmatpush1.bf16.msra.mxu0 0
        %595 = vmatprep.subr.bf16.mxu0 0
        %596 = vmatpush1.bf16.msra.mxu0 0
        %597 = vmatprep.subr.bf16.mxu0 0
        %598 = vmatpush1.bf16.msra.mxu0 0
        %599 = vmatprep.subr.bf16.mxu0 0
        %600 = vmatpush1.bf16.msra.mxu0 0
        %601 = vmatprep.subr.bf16.mxu0 0
        %602 = vmatpush1.bf16.msra.mxu0 0
        %603 = vmatprep.subr.bf16.mxu0 0
        %604 = vmatpush1.bf16.msra.mxu0 0
        %605 = vmatprep.subr.bf16.mxu0 0
        %606 = vmatpush1.bf16.msra.mxu0 0
        %607 = vmatprep.mubr.bf16.mxu0 0
        %608 = vmatmul.mubr.bf16.gmra.mrb[0].mxu0 %v573
        %v609 = vpop.f32.mrb[0].mxu0
        %v610 = vadd.f32 %v567, %v609
        %v611 = vpop.f32.mrb[0].mxu0
        %v612 = vpop.f32.mrb[0].mxu0
        %v613 = vpop.f32.mrb[0].mxu0
        %614 = vdwg.mxu0
        %v615 = vlaneseq
        %v616 = vshrl.u32 %v615, 7
        %v617 = vsub.s32 0, %v616
        %v618 = vrot.slane %v505, %v617
        %vm619 = vcmp.eq.s32.totalorder %v515, %v618
        %vm620 = vcmp.eq.s32.totalorder %v516, %v618
        %v621 = vsel %vm619, 1, 0
        %v622 = vsel %vm620, 1, 0
        %v623 = vcvt.s32.f32 %v621
        %v624 = vcvt.s32.f32 %v622
        %v625 = vpack.c.bf16 %v624, %v623
        %626 = vmatprep.subr.bf16.mxu0 0
        %627 = vmatpush1.bf16.msra.mxu0 %v625
        %628 = vmatprep.subr.bf16.mxu0 0
        %629 = vmatpush1.bf16.msra.mxu0 0
        %630 = vmatprep.subr.bf16.mxu0 0
        %631 = vmatpush1.bf16.msra.mxu0 0
        %632 = vmatprep.subr.bf16.mxu0 0
        %633 = vmatpush1.bf16.msra.mxu0 0
        %634 = vmatprep.subr.bf16.mxu0 0
        %635 = vmatpush1.bf16.msra.mxu0 0
        %636 = vmatprep.subr.bf16.mxu0 0
        %637 = vmatpush1.bf16.msra.mxu0 0
        %638 = vmatprep.subr.bf16.mxu0 0
        %639 = vmatpush1.bf16.msra.mxu0 0
        %640 = vmatprep.subr.bf16.mxu0 0
        %641 = vmatpush1.bf16.msra.mxu0 0
        %642 = vmatprep.subr.bf16.mxu0 0
        %643 = vmatpush1.bf16.msra.mxu0 0
        %644 = vmatprep.subr.bf16.mxu0 0
        %645 = vmatpush1.bf16.msra.mxu0 0
        %646 = vmatprep.subr.bf16.mxu0 0
        %647 = vmatpush1.bf16.msra.mxu0 0
        %648 = vmatprep.subr.bf16.mxu0 0
        %649 = vmatpush1.bf16.msra.mxu0 0
        %650 = vmatprep.subr.bf16.mxu0 0
        %651 = vmatpush1.bf16.msra.mxu0 0
        %652 = vmatprep.subr.bf16.mxu0 0
        %653 = vmatpush1.bf16.msra.mxu0 0
        %654 = vmatprep.subr.bf16.mxu0 0
        %655 = vmatpush1.bf16.msra.mxu0 0
        %656 = vmatprep.subr.bf16.mxu0 0
        %657 = vmatpush1.bf16.msra.mxu0 0
        %658 = vmatprep.mubr.bf16.mxu0 0
        %659 = vmatmul.mubr.bf16.gmra.mrb[0].mxu0 %v530
        %v660 = vpop.f32.mrb[0].mxu0
        %v661 = vadd.f32 0.0, %v660
        %v662 = vpop.f32.mrb[0].mxu0
        %v663 = vpop.f32.mrb[0].mxu0
        %v664 = vpop.f32.mrb[0].mxu0
        %665 = vdwg.mxu0
        %666 = vmatprep.subr.bf16.mxu0 0
        %667 = vmatpush1.bf16.msra.mxu0 %v625
        %668 = vmatprep.subr.bf16.mxu0 0
        %669 = vmatpush1.bf16.msra.mxu0 0
        %670 = vmatprep.subr.bf16.mxu0 0
        %671 = vmatpush1.bf16.msra.mxu0 0
        %672 = vmatprep.subr.bf16.mxu0 0
        %673 = vmatpush1.bf16.msra.mxu0 0
        %674 = vmatprep.subr.bf16.mxu0 0
        %675 = vmatpush1.bf16.msra.mxu0 0
        %676 = vmatprep.subr.bf16.mxu0 0
        %677 = vmatpush1.bf16.msra.mxu0 0
        %678 = vmatprep.subr.bf16.mxu0 0
        %679 = vmatpush1.bf16.msra.mxu0 0
        %680 = vmatprep.subr.bf16.mxu0 0
        %681 = vmatpush1.bf16.msra.mxu0 0
        %682 = vmatprep.subr.bf16.mxu0 0
        %683 = vmatpush1.bf16.msra.mxu0 0
        %684 = vmatprep.subr.bf16.mxu0 0
        %685 = vmatpush1.bf16.msra.mxu0 0
        %686 = vmatprep.subr.bf16.mxu0 0
        %687 = vmatpush1.bf16.msra.mxu0 0
        %688 = vmatprep.subr.bf16.mxu0 0
        %689 = vmatpush1.bf16.msra.mxu0 0
        %690 = vmatprep.subr.bf16.mxu0 0
        %691 = vmatpush1.bf16.msra.mxu0 0
        %692 = vmatprep.subr.bf16.mxu0 0
        %693 = vmatpush1.bf16.msra.mxu0 0
        %694 = vmatprep.subr.bf16.mxu0 0
        %695 = vmatpush1.bf16.msra.mxu0 0
        %696 = vmatprep.subr.bf16.mxu0 0
        %697 = vmatpush1.bf16.msra.mxu0 0
        %698 = vmatprep.mubr.bf16.mxu0 0
        %699 = vmatmul.mubr.bf16.gmra.mrb[0].mxu0 %v573
        %v700 = vpop.f32.mrb[0].mxu0
        %v701 = vadd.f32 %v661, %v700
        %v702 = vpop.f32.mrb[0].mxu0
        %v703 = vpop.f32.mrb[0].mxu0
        %v704 = vpop.f32.mrb[0].mxu0
        %705 = vdwg.mxu0
        %v706 = vlaneseq
        %v707 = vshrl.u32 %v706, 7
        %v708 = vsub.s32 0, %v707
        %v709 = vrot.slane %v506, %v708
        %vm710 = vcmp.eq.s32.totalorder %v515, %v709
        %vm711 = vcmp.eq.s32.totalorder %v516, %v709
        %v712 = vsel %vm710, 1, 0
        %v713 = vsel %vm711, 1, 0
        %v714 = vcvt.s32.f32 %v712
        %v715 = vcvt.s32.f32 %v713
        %v716 = vpack.c.bf16 %v715, %v714
        %717 = vmatprep.subr.bf16.mxu0 0
        %718 = vmatpush1.bf16.msra.mxu0 %v716
        %719 = vmatprep.subr.bf16.mxu0 0
        %720 = vmatpush1.bf16.msra.mxu0 0
        %721 = vmatprep.subr.bf16.mxu0 0
        %722 = vmatpush1.bf16.msra.mxu0 0
        %723 = vmatprep.subr.bf16.mxu0 0
        %724 = vmatpush1.bf16.msra.mxu0 0
        %725 = vmatprep.subr.bf16.mxu0 0
        %726 = vmatpush1.bf16.msra.mxu0 0
        %727 = vmatprep.subr.bf16.mxu0 0
        %728 = vmatpush1.bf16.msra.mxu0 0
        %729 = vmatprep.subr.bf16.mxu0 0
        %730 = vmatpush1.bf16.msra.mxu0 0
        %731 = vmatprep.subr.bf16.mxu0 0
        %732 = vmatpush1.bf16.msra.mxu0 0
        %733 = vmatprep.subr.bf16.mxu0 0
        %734 = vmatpush1.bf16.msra.mxu0 0
        %735 = vmatprep.subr.bf16.mxu0 0
        %736 = vmatpush1.bf16.msra.mxu0 0
        %737 = vmatprep.subr.bf16.mxu0 0
        %738 = vmatpush1.bf16.msra.mxu0 0
        %739 = vmatprep.subr.bf16.mxu0 0
        %740 = vmatpush1.bf16.msra.mxu0 0
        %741 = vmatprep.subr.bf16.mxu0 0
        %742 = vmatpush1.bf16.msra.mxu0 0
        %743 = vmatprep.subr.bf16.mxu0 0
        %744 = vmatpush1.bf16.msra.mxu0 0
        %745 = vmatprep.subr.bf16.mxu0 0
        %746 = vmatpush1.bf16.msra.mxu0 0
        %747 = vmatprep.subr.bf16.mxu0 0
        %748 = vmatpush1.bf16.msra.mxu0 0
        %749 = vmatprep.mubr.bf16.mxu0 0
        %750 = vmatmul.mubr.bf16.gmra.mrb[0].mxu0 %v530
        %v751 = vpop.f32.mrb[0].mxu0
        %v752 = vadd.f32 0.0, %v751
        %v753 = vpop.f32.mrb[0].mxu0
        %v754 = vpop.f32.mrb[0].mxu0
        %v755 = vpop.f32.mrb[0].mxu0
        %756 = vdwg.mxu0
        %757 = vmatprep.subr.bf16.mxu0 0
        %758 = vmatpush1.bf16.msra.mxu0 %v716
        %759 = vmatprep.subr.bf16.mxu0 0
        %760 = vmatpush1.bf16.msra.mxu0 0
        %761 = vmatprep.subr.bf16.mxu0 0
        %762 = vmatpush1.bf16.msra.mxu0 0
        %763 = vmatprep.subr.bf16.mxu0 0
        %764 = vmatpush1.bf16.msra.mxu0 0
        %765 = vmatprep.subr.bf16.mxu0 0
        %766 = vmatpush1.bf16.msra.mxu0 0
        %767 = vmatprep.subr.bf16.mxu0 0
        %768 = vmatpush1.bf16.msra.mxu0 0
        %769 = vmatprep.subr.bf16.mxu0 0
        %770 = vmatpush1.bf16.msra.mxu0 0
        %771 = vmatprep.subr.bf16.mxu0 0
        %772 = vmatpush1.bf16.msra.mxu0 0
        %773 = vmatprep.subr.bf16.mxu0 0
        %774 = vmatpush1.bf16.msra.mxu0 0
        %775 = vmatprep.subr.bf16.mxu0 0
        %776 = vmatpush1.bf16.msra.mxu0 0
        %777 = vmatprep.subr.bf16.mxu0 0
        %778 = vmatpush1.bf16.msra.mxu0 0
        %779 = vmatprep.subr.bf16.mxu0 0
        %780 = vmatpush1.bf16.msra.mxu0 0
        %781 = vmatprep.subr.bf16.mxu0 0
        %782 = vmatpush1.bf16.msra.mxu0 0
        %783 = vmatprep.subr.bf16.mxu0 0
        %784 = vmatpush1.bf16.msra.mxu0 0
        %785 = vmatprep.subr.bf16.mxu0 0
        %786 = vmatpush1.bf16.msra.mxu0 0
        %787 = vmatprep.subr.bf16.mxu0 0
        %788 = vmatpush1.bf16.msra.mxu0 0
        %789 = vmatprep.mubr.bf16.mxu0 0
        %790 = vmatmul.mubr.bf16.gmra.mrb[0].mxu0 %v573
        %v791 = vpop.f32.mrb[0].mxu0
        %v792 = vadd.f32 %v752, %v791
        %v793 = vpop.f32.mrb[0].mxu0
        %v794 = vpop.f32.mrb[0].mxu0
        %v795 = vpop.f32.mrb[0].mxu0
        %796 = vdwg.mxu0
        %v797 = vlaneseq
        %v798 = vshrl.u32 %v797, 7
        %v799 = vsub.s32 0, %v798
        %v800 = vrot.slane %v507, %v799
        %vm801 = vcmp.eq.s32.totalorder %v515, %v800
        %vm802 = vcmp.eq.s32.totalorder %v516, %v800
        %v803 = vsel %vm801, 1, 0
        %v804 = vsel %vm802, 1, 0
        %v805 = vcvt.s32.f32 %v803
        %v806 = vcvt.s32.f32 %v804
        %v807 = vpack.c.bf16 %v806, %v805
        %808 = vmatprep.subr.bf16.mxu0 0
        %809 = vmatpush1.bf16.msra.mxu0 %v807
        %810 = vmatprep.subr.bf16.mxu0 0
        %811 = vmatpush1.bf16.msra.mxu0 0
        %812 = vmatprep.subr.bf16.mxu0 0
        %813 = vmatpush1.bf16.msra.mxu0 0
        %814 = vmatprep.subr.bf16.mxu0 0
        %815 = vmatpush1.bf16.msra.mxu0 0
        %816 = vmatprep.subr.bf16.mxu0 0
        %817 = vmatpush1.bf16.msra.mxu0 0
        %818 = vmatprep.subr.bf16.mxu0 0
        %819 = vmatpush1.bf16.msra.mxu0 0
        %820 = vmatprep.subr.bf16.mxu0 0
        %821 = vmatpush1.bf16.msra.mxu0 0
        %822 = vmatprep.subr.bf16.mxu0 0
        %823 = vmatpush1.bf16.msra.mxu0 0
        %824 = vmatprep.subr.bf16.mxu0 0
        %825 = vmatpush1.bf16.msra.mxu0 0
        %826 = vmatprep.subr.bf16.mxu0 0
        %827 = vmatpush1.bf16.msra.mxu0 0
        %828 = vmatprep.subr.bf16.mxu0 0
        %829 = vmatpush1.bf16.msra.mxu0 0
        %830 = vmatprep.subr.bf16.mxu0 0
        %831 = vmatpush1.bf16.msra.mxu0 0
        %832 = vmatprep.subr.bf16.mxu0 0
        %833 = vmatpush1.bf16.msra.mxu0 0
        %834 = vmatprep.subr.bf16.mxu0 0
        %835 = vmatpush1.bf16.msra.mxu0 0
        %836 = vmatprep.subr.bf16.mxu0 0
        %837 = vmatpush1.bf16.msra.mxu0 0
        %838 = vmatprep.subr.bf16.mxu0 0
        %839 = vmatpush1.bf16.msra.mxu0 0
        %840 = vmatprep.mubr.bf16.mxu0 0
        %841 = vmatmul.mubr.bf16.gmra.mrb[0].mxu0 %v530
        %v842 = vpop.f32.mrb[0].mxu0
        %v843 = vadd.f32 0.0, %v842
        %v844 = vpop.f32.mrb[0].mxu0
        %v845 = vpop.f32.mrb[0].mxu0
        %v846 = vpop.f32.mrb[0].mxu0
        %847 = vdwg.mxu0
        %848 = vmatprep.subr.bf16.mxu0 0
        %849 = vmatpush1.bf16.msra.mxu0 %v807
        %850 = vmatprep.subr.bf16.mxu0 0
        %851 = vmatpush1.bf16.msra.mxu0 0
        %852 = vmatprep.subr.bf16.mxu0 0
        %853 = vmatpush1.bf16.msra.mxu0 0
        %854 = vmatprep.subr.bf16.mxu0 0
        %855 = vmatpush1.bf16.msra.mxu0 0
        %856 = vmatprep.subr.bf16.mxu0 0
        %857 = vmatpush1.bf16.msra.mxu0 0
        %858 = vmatprep.subr.bf16.mxu0 0
        %859 = vmatpush1.bf16.msra.mxu0 0
        %860 = vmatprep.subr.bf16.mxu0 0
        %861 = vmatpush1.bf16.msra.mxu0 0
        %862 = vmatprep.subr.bf16.mxu0 0
        %863 = vmatpush1.bf16.msra.mxu0 0
        %864 = vmatprep.subr.bf16.mxu0 0
        %865 = vmatpush1.bf16.msra.mxu0 0
        %866 = vmatprep.subr.bf16.mxu0 0
        %867 = vmatpush1.bf16.msra.mxu0 0
        %868 = vmatprep.subr.bf16.mxu0 0
        %869 = vmatpush1.bf16.msra.mxu0 0
        %870 = vmatprep.subr.bf16.mxu0 0
        %871 = vmatpush1.bf16.msra.mxu0 0
        %872 = vmatprep.subr.bf16.mxu0 0
        %873 = vmatpush1.bf16.msra.mxu0 0
        %874 = vmatprep.subr.bf16.mxu0 0
        %875 = vmatpush1.bf16.msra.mxu0 0
        %876 = vmatprep.subr.bf16.mxu0 0
        %877 = vmatpush1.bf16.msra.mxu0 0
        %878 = vmatprep.subr.bf16.mxu0 0
        %879 = vmatpush1.bf16.msra.mxu0 0
        %880 = vmatprep.mubr.bf16.mxu0 0
        %881 = vmatmul.mubr.bf16.gmra.mrb[0].mxu0 %v573
        %v882 = vpop.f32.mrb[0].mxu0
        %v883 = vadd.f32 %v843, %v882
        %v884 = vpop.f32.mrb[0].mxu0
        %v885 = vpop.f32.mrb[0].mxu0
        %v886 = vpop.f32.mrb[0].mxu0
        %887 = vdwg.mxu0
        %v888 = vlaneseq
        %v889 = vshrl.u32 %v888, 7
        %v890 = vsub.s32 0, %v889
        %v891 = vrot.slane %v508, %v890
        %vm892 = vcmp.eq.s32.totalorder %v515, %v891
        %vm893 = vcmp.eq.s32.totalorder %v516, %v891
        %v894 = vsel %vm892, 1, 0
        %v895 = vsel %vm893, 1, 0
        %v896 = vcvt.s32.f32 %v894
        %v897 = vcvt.s32.f32 %v895
        %v898 = vpack.c.bf16 %v897, %v896
        %899 = vmatprep.subr.bf16.mxu0 0
        %900 = vmatpush1.bf16.msra.mxu0 %v898
        %901 = vmatprep.subr.bf16.mxu0 0
        %902 = vmatpush1.bf16.msra.mxu0 0
        %903 = vmatprep.subr.bf16.mxu0 0
        %904 = vmatpush1.bf16.msra.mxu0 0
        %905 = vmatprep.subr.bf16.mxu0 0
        %906 = vmatpush1.bf16.msra.mxu0 0
        %907 = vmatprep.subr.bf16.mxu0 0
        %908 = vmatpush1.bf16.msra.mxu0 0
        %909 = vmatprep.subr.bf16.mxu0 0
        %910 = vmatpush1.bf16.msra.mxu0 0
        %911 = vmatprep.subr.bf16.mxu0 0
        %912 = vmatpush1.bf16.msra.mxu0 0
        %913 = vmatprep.subr.bf16.mxu0 0
        %914 = vmatpush1.bf16.msra.mxu0 0
        %915 = vmatprep.subr.bf16.mxu0 0
        %916 = vmatpush1.bf16.msra.mxu0 0
        %917 = vmatprep.subr.bf16.mxu0 0
        %918 = vmatpush1.bf16.msra.mxu0 0
        %919 = vmatprep.subr.bf16.mxu0 0
        %920 = vmatpush1.bf16.msra.mxu0 0
        %921 = vmatprep.subr.bf16.mxu0 0
        %922 = vmatpush1.bf16.msra.mxu0 0
        %923 = vmatprep.subr.bf16.mxu0 0
        %924 = vmatpush1.bf16.msra.mxu0 0
        %925 = vmatprep.subr.bf16.mxu0 0
        %926 = vmatpush1.bf16.msra.mxu0 0
        %927 = vmatprep.subr.bf16.mxu0 0
        %928 = vmatpush1.bf16.msra.mxu0 0
        %929 = vmatprep.subr.bf16.mxu0 0
        %930 = vmatpush1.bf16.msra.mxu0 0
        %931 = vmatprep.mubr.bf16.mxu0 0
        %932 = vmatmul.mubr.bf16.gmra.mrb[0].mxu0 %v530
        %v933 = vpop.f32.mrb[0].mxu0
        %v934 = vadd.f32 0.0, %v933
        %v935 = vpop.f32.mrb[0].mxu0
        %v936 = vpop.f32.mrb[0].mxu0
        %v937 = vpop.f32.mrb[0].mxu0
        %938 = vdwg.mxu0
        %939 = vmatprep.subr.bf16.mxu0 0
        %940 = vmatpush1.bf16.msra.mxu0 %v898
        %941 = vmatprep.subr.bf16.mxu0 0
        %942 = vmatpush1.bf16.msra.mxu0 0
        %943 = vmatprep.subr.bf16.mxu0 0
        %944 = vmatpush1.bf16.msra.mxu0 0
        %945 = vmatprep.subr.bf16.mxu0 0
        %946 = vmatpush1.bf16.msra.mxu0 0
        %947 = vmatprep.subr.bf16.mxu0 0
        %948 = vmatpush1.bf16.msra.mxu0 0
        %949 = vmatprep.subr.bf16.mxu0 0
        %950 = vmatpush1.bf16.msra.mxu0 0
        %951 = vmatprep.subr.bf16.mxu0 0
        %952 = vmatpush1.bf16.msra.mxu0 0
        %953 = vmatprep.subr.bf16.mxu0 0
        %954 = vmatpush1.bf16.msra.mxu0 0
        %955 = vmatprep.subr.bf16.mxu0 0
        %956 = vmatpush1.bf16.msra.mxu0 0
        %957 = vmatprep.subr.bf16.mxu0 0
        %958 = vmatpush1.bf16.msra.mxu0 0
        %959 = vmatprep.subr.bf16.mxu0 0
        %960 = vmatpush1.bf16.msra.mxu0 0
        %961 = vmatprep.subr.bf16.mxu0 0
        %962 = vmatpush1.bf16.msra.mxu0 0
        %963 = vmatprep.subr.bf16.mxu0 0
        %964 = vmatpush1.bf16.msra.mxu0 0
        %965 = vmatprep.subr.bf16.mxu0 0
        %966 = vmatpush1.bf16.msra.mxu0 0
        %967 = vmatprep.subr.bf16.mxu0 0
        %968 = vmatpush1.bf16.msra.mxu0 0
        %969 = vmatprep.subr.bf16.mxu0 0
        %970 = vmatpush1.bf16.msra.mxu0 0
        %971 = vmatprep.mubr.bf16.mxu0 0
        %972 = vmatmul.mubr.bf16.gmra.mrb[0].mxu0 %v573
        %v973 = vpop.f32.mrb[0].mxu0
        %v974 = vadd.f32 %v934, %v973
        %v975 = vpop.f32.mrb[0].mxu0
        %v976 = vpop.f32.mrb[0].mxu0
        %v977 = vpop.f32.mrb[0].mxu0
        %978 = vdwg.mxu0
        %v979 = vlaneseq
        %v980 = vshrl.u32 %v979, 7
        %v981 = vsub.s32 0, %v980
        %v982 = vrot.slane %v509, %v981
        %vm983 = vcmp.eq.s32.totalorder %v515, %v982
        %vm984 = vcmp.eq.s32.totalorder %v516, %v982
        %v985 = vsel %vm983, 1, 0
        %v986 = vsel %vm984, 1, 0
        %v987 = vcvt.s32.f32 %v985
        %v988 = vcvt.s32.f32 %v986
        %v989 = vpack.c.bf16 %v988, %v987
        %990 = vmatprep.subr.bf16.mxu0 0
        %991 = vmatpush1.bf16.msra.mxu0 %v989
        %992 = vmatprep.subr.bf16.mxu0 0
        %993 = vmatpush1.bf16.msra.mxu0 0
        %994 = vmatprep.subr.bf16.mxu0 0
        %995 = vmatpush1.bf16.msra.mxu0 0
        %996 = vmatprep.subr.bf16.mxu0 0
        %997 = vmatpush1.bf16.msra.mxu0 0
        %998 = vmatprep.subr.bf16.mxu0 0
        %999 = vmatpush1.bf16.msra.mxu0 0
        %1000 = vmatprep.subr.bf16.mxu0 0
        %1001 = vmatpush1.bf16.msra.mxu0 0
        %1002 = vmatprep.subr.bf16.mxu0 0
        %1003 = vmatpush1.bf16.msra.mxu0 0
        %1004 = vmatprep.subr.bf16.mxu0 0
        %1005 = vmatpush1.bf16.msra.mxu0 0
        %1006 = vmatprep.subr.bf16.mxu0 0
        %1007 = vmatpush1.bf16.msra.mxu0 0
        %1008 = vmatprep.subr.bf16.mxu0 0
        %1009 = vmatpush1.bf16.msra.mxu0 0
        %1010 = vmatprep.subr.bf16.mxu0 0
        %1011 = vmatpush1.bf16.msra.mxu0 0
        %1012 = vmatprep.subr.bf16.mxu0 0
        %1013 = vmatpush1.bf16.msra.mxu0 0
        %1014 = vmatprep.subr.bf16.mxu0 0
        %1015 = vmatpush1.bf16.msra.mxu0 0
        %1016 = vmatprep.subr.bf16.mxu0 0
        %1017 = vmatpush1.bf16.msra.mxu0 0
        %1018 = vmatprep.subr.bf16.mxu0 0
        %1019 = vmatpush1.bf16.msra.mxu0 0
        %1020 = vmatprep.subr.bf16.mxu0 0
        %1021 = vmatpush1.bf16.msra.mxu0 0
        %1022 = vmatprep.mubr.bf16.mxu0 0
        %1023 = vmatmul.mubr.bf16.gmra.mrb[0].mxu0 %v530
        %v1024 = vpop.f32.mrb[0].mxu0
        %v1025 = vadd.f32 0.0, %v1024
        %v1026 = vpop.f32.mrb[0].mxu0
        %v1027 = vpop.f32.mrb[0].mxu0
        %v1028 = vpop.f32.mrb[0].mxu0
        %1029 = vdwg.mxu0
        %1030 = vmatprep.subr.bf16.mxu0 0
        %1031 = vmatpush1.bf16.msra.mxu0 %v989
        %1032 = vmatprep.subr.bf16.mxu0 0
        %1033 = vmatpush1.bf16.msra.mxu0 0
        %1034 = vmatprep.subr.bf16.mxu0 0
        %1035 = vmatpush1.bf16.msra.mxu0 0
        %1036 = vmatprep.subr.bf16.mxu0 0
        %1037 = vmatpush1.bf16.msra.mxu0 0
        %1038 = vmatprep.subr.bf16.mxu0 0
        %1039 = vmatpush1.bf16.msra.mxu0 0
        %1040 = vmatprep.subr.bf16.mxu0 0
        %1041 = vmatpush1.bf16.msra.mxu0 0
        %1042 = vmatprep.subr.bf16.mxu0 0
        %1043 = vmatpush1.bf16.msra.mxu0 0
        %1044 = vmatprep.subr.bf16.mxu0 0
        %1045 = vmatpush1.bf16.msra.mxu0 0
        %1046 = vmatprep.subr.bf16.mxu0 0
        %1047 = vmatpush1.bf16.msra.mxu0 0
        %1048 = vmatprep.subr.bf16.mxu0 0
        %1049 = vmatpush1.bf16.msra.mxu0 0
        %1050 = vmatprep.subr.bf16.mxu0 0
        %1051 = vmatpush1.bf16.msra.mxu0 0
        %1052 = vmatprep.subr.bf16.mxu0 0
        %1053 = vmatpush1.bf16.msra.mxu0 0
        %1054 = vmatprep.subr.bf16.mxu0 0
        %1055 = vmatpush1.bf16.msra.mxu0 0
        %1056 = vmatprep.subr.bf16.mxu0 0
        %1057 = vmatpush1.bf16.msra.mxu0 0
        %1058 = vmatprep.subr.bf16.mxu0 0
        %1059 = vmatpush1.bf16.msra.mxu0 0
        %1060 = vmatprep.subr.bf16.mxu0 0
        %1061 = vmatpush1.bf16.msra.mxu0 0
        %1062 = vmatprep.mubr.bf16.mxu0 0
        %1063 = vmatmul.mubr.bf16.gmra.mrb[0].mxu0 %v573
        %v1064 = vpop.f32.mrb[0].mxu0
        %v1065 = vadd.f32 %v1025, %v1064
        %v1066 = vpop.f32.mrb[0].mxu0
        %v1067 = vpop.f32.mrb[0].mxu0
        %v1068 = vpop.f32.mrb[0].mxu0
        %1069 = vdwg.mxu0
        %v1070 = vlaneseq
        %v1071 = vshrl.u32 %v1070, 7
        %v1072 = vsub.s32 0, %v1071
        %v1073 = vrot.slane %v510, %v1072
        %vm1074 = vcmp.eq.s32.totalorder %v515, %v1073
        %vm1075 = vcmp.eq.s32.totalorder %v516, %v1073
        %v1076 = vsel %vm1074, 1, 0
        %v1077 = vsel %vm1075, 1, 0
        %v1078 = vcvt.s32.f32 %v1076
        %v1079 = vcvt.s32.f32 %v1077
        %v1080 = vpack.c.bf16 %v1079, %v1078
        %1081 = vmatprep.subr.bf16.mxu0 0
        %1082 = vmatpush1.bf16.msra.mxu0 %v1080
        %1083 = vmatprep.subr.bf16.mxu0 0
        %1084 = vmatpush1.bf16.msra.mxu0 0
        %1085 = vmatprep.subr.bf16.mxu0 0
        %1086 = vmatpush1.bf16.msra.mxu0 0
        %1087 = vmatprep.subr.bf16.mxu0 0
        %1088 = vmatpush1.bf16.msra.mxu0 0
        %1089 = vmatprep.subr.bf16.mxu0 0
        %1090 = vmatpush1.bf16.msra.mxu0 0
        %1091 = vmatprep.subr.bf16.mxu0 0
        %1092 = vmatpush1.bf16.msra.mxu0 0
        %1093 = vmatprep.subr.bf16.mxu0 0
        %1094 = vmatpush1.bf16.msra.mxu0 0
        %1095 = vmatprep.subr.bf16.mxu0 0
        %1096 = vmatpush1.bf16.msra.mxu0 0
        %1097 = vmatprep.subr.bf16.mxu0 0
        %1098 = vmatpush1.bf16.msra.mxu0 0
        %1099 = vmatprep.subr.bf16.mxu0 0
        %1100 = vmatpush1.bf16.msra.mxu0 0
        %1101 = vmatprep.subr.bf16.mxu0 0
        %1102 = vmatpush1.bf16.msra.mxu0 0
        %1103 = vmatprep.subr.bf16.mxu0 0
        %1104 = vmatpush1.bf16.msra.mxu0 0
        %1105 = vmatprep.subr.bf16.mxu0 0
        %1106 = vmatpush1.bf16.msra.mxu0 0
        %1107 = vmatprep.subr.bf16.mxu0 0
        %1108 = vmatpush1.bf16.msra.mxu0 0
        %1109 = vmatprep.subr.bf16.mxu0 0
        %1110 = vmatpush1.bf16.msra.mxu0 0
        %1111 = vmatprep.subr.bf16.mxu0 0
        %1112 = vmatpush1.bf16.msra.mxu0 0
        %1113 = vmatprep.mubr.bf16.mxu0 0
        %1114 = vmatmul.mubr.bf16.gmra.mrb[0].mxu0 %v530
        %v1115 = vpop.f32.mrb[0].mxu0
        %v1116 = vadd.f32 0.0, %v1115
        %v1117 = vpop.f32.mrb[0].mxu0
        %v1118 = vpop.f32.mrb[0].mxu0
        %v1119 = vpop.f32.mrb[0].mxu0
        %1120 = vdwg.mxu0
        %1121 = vmatprep.subr.bf16.mxu0 0
        %1122 = vmatpush1.bf16.msra.mxu0 %v1080
        %1123 = vmatprep.subr.bf16.mxu0 0
        %1124 = vmatpush1.bf16.msra.mxu0 0
        %1125 = vmatprep.subr.bf16.mxu0 0
        %1126 = vmatpush1.bf16.msra.mxu0 0
        %1127 = vmatprep.subr.bf16.mxu0 0
        %1128 = vmatpush1.bf16.msra.mxu0 0
        %1129 = vmatprep.subr.bf16.mxu0 0
        %1130 = vmatpush1.bf16.msra.mxu0 0
        %1131 = vmatprep.subr.bf16.mxu0 0
        %1132 = vmatpush1.bf16.msra.mxu0 0
        %1133 = vmatprep.subr.bf16.mxu0 0
        %1134 = vmatpush1.bf16.msra.mxu0 0
        %1135 = vmatprep.subr.bf16.mxu0 0
        %1136 = vmatpush1.bf16.msra.mxu0 0
        %1137 = vmatprep.subr.bf16.mxu0 0
        %1138 = vmatpush1.bf16.msra.mxu0 0
        %1139 = vmatprep.subr.bf16.mxu0 0
        %1140 = vmatpush1.bf16.msra.mxu0 0
        %1141 = vmatprep.subr.bf16.mxu0 0
        %1142 = vmatpush1.bf16.msra.mxu0 0
        %1143 = vmatprep.subr.bf16.mxu0 0
        %1144 = vmatpush1.bf16.msra.mxu0 0
        %1145 = vmatprep.subr.bf16.mxu0 0
        %1146 = vmatpush1.bf16.msra.mxu0 0
        %1147 = vmatprep.subr.bf16.mxu0 0
        %1148 = vmatpush1.bf16.msra.mxu0 0
        %1149 = vmatprep.subr.bf16.mxu0 0
        %1150 = vmatpush1.bf16.msra.mxu0 0
        %1151 = vmatprep.subr.bf16.mxu0 0
        %1152 = vmatpush1.bf16.msra.mxu0 0
        %1153 = vmatprep.mubr.bf16.mxu0 0
        %1154 = vmatmul.mubr.bf16.gmra.mrb[0].mxu0 %v573
        %v1155 = vpop.f32.mrb[0].mxu0
        %v1156 = vadd.f32 %v1116, %v1155
        %v1157 = vpop.f32.mrb[0].mxu0
        %v1158 = vpop.f32.mrb[0].mxu0
        %v1159 = vpop.f32.mrb[0].mxu0
        %1160 = vdwg.mxu0
        %v1161 = vlaneseq
        %v1162 = vshrl.u32 %v1161, 7
        %v1163 = vsub.s32 0, %v1162
        %v1164 = vrot.slane %v511, %v1163
        %vm1165 = vcmp.eq.s32.totalorder %v515, %v1164
        %vm1166 = vcmp.eq.s32.totalorder %v516, %v1164
        %v1167 = vsel %vm1165, 1, 0
        %v1168 = vsel %vm1166, 1, 0
        %v1169 = vcvt.s32.f32 %v1167
        %v1170 = vcvt.s32.f32 %v1168
        %v1171 = vpack.c.bf16 %v1170, %v1169
        %1172 = vmatprep.subr.bf16.mxu0 0
        %1173 = vmatpush1.bf16.msra.mxu0 %v1171
        %1174 = vmatprep.subr.bf16.mxu0 0
        %1175 = vmatpush1.bf16.msra.mxu0 0
        %1176 = vmatprep.subr.bf16.mxu0 0
        %1177 = vmatpush1.bf16.msra.mxu0 0
        %1178 = vmatprep.subr.bf16.mxu0 0
        %1179 = vmatpush1.bf16.msra.mxu0 0
        %1180 = vmatprep.subr.bf16.mxu0 0
        %1181 = vmatpush1.bf16.msra.mxu0 0
        %1182 = vmatprep.subr.bf16.mxu0 0
        %1183 = vmatpush1.bf16.msra.mxu0 0
        %1184 = vmatprep.subr.bf16.mxu0 0
        %1185 = vmatpush1.bf16.msra.mxu0 0
        %1186 = vmatprep.subr.bf16.mxu0 0
        %1187 = vmatpush1.bf16.msra.mxu0 0
        %1188 = vmatprep.subr.bf16.mxu0 0
        %1189 = vmatpush1.bf16.msra.mxu0 0
        %1190 = vmatprep.subr.bf16.mxu0 0
        %1191 = vmatpush1.bf16.msra.mxu0 0
        %1192 = vmatprep.subr.bf16.mxu0 0
        %1193 = vmatpush1.bf16.msra.mxu0 0
        %1194 = vmatprep.subr.bf16.mxu0 0
        %1195 = vmatpush1.bf16.msra.mxu0 0
        %1196 = vmatprep.subr.bf16.mxu0 0
        %1197 = vmatpush1.bf16.msra.mxu0 0
        %1198 = vmatprep.subr.bf16.mxu0 0
        %1199 = vmatpush1.bf16.msra.mxu0 0
        %1200 = vmatprep.subr.bf16.mxu0 0
        %1201 = vmatpush1.bf16.msra.mxu0 0
        %1202 = vmatprep.subr.bf16.mxu0 0
        %1203 = vmatpush1.bf16.msra.mxu0 0
        %1204 = vmatprep.mubr.bf16.mxu0 0
        %1205 = vmatmul.mubr.bf16.gmra.mrb[0].mxu0 %v530
        %v1206 = vpop.f32.mrb[0].mxu0
        %v1207 = vadd.f32 0.0, %v1206
        %v1208 = vpop.f32.mrb[0].mxu0
        %v1209 = vpop.f32.mrb[0].mxu0
        %v1210 = vpop.f32.mrb[0].mxu0
        %1211 = vdwg.mxu0
        %1212 = vmatprep.subr.bf16.mxu0 0
        %1213 = vmatpush1.bf16.msra.mxu0 %v1171
        %1214 = vmatprep.subr.bf16.mxu0 0
        %1215 = vmatpush1.bf16.msra.mxu0 0
        %1216 = vmatprep.subr.bf16.mxu0 0
        %1217 = vmatpush1.bf16.msra.mxu0 0
        %1218 = vmatprep.subr.bf16.mxu0 0
        %1219 = vmatpush1.bf16.msra.mxu0 0
        %1220 = vmatprep.subr.bf16.mxu0 0
        %1221 = vmatpush1.bf16.msra.mxu0 0
        %1222 = vmatprep.subr.bf16.mxu0 0
        %1223 = vmatpush1.bf16.msra.mxu0 0
        %1224 = vmatprep.subr.bf16.mxu0 0
        %1225 = vmatpush1.bf16.msra.mxu0 0
        %1226 = vmatprep.subr.bf16.mxu0 0
        %1227 = vmatpush1.bf16.msra.mxu0 0
        %1228 = vmatprep.subr.bf16.mxu0 0
        %1229 = vmatpush1.bf16.msra.mxu0 0
        %1230 = vmatprep.subr.bf16.mxu0 0
        %1231 = vmatpush1.bf16.msra.mxu0 0
        %1232 = vmatprep.subr.bf16.mxu0 0
        %1233 = vmatpush1.bf16.msra.mxu0 0
        %1234 = vmatprep.subr.bf16.mxu0 0
        %1235 = vmatpush1.bf16.msra.mxu0 0
        %1236 = vmatprep.subr.bf16.mxu0 0
        %1237 = vmatpush1.bf16.msra.mxu0 0
        %1238 = vmatprep.subr.bf16.mxu0 0
        %1239 = vmatpush1.bf16.msra.mxu0 0
        %1240 = vmatprep.subr.bf16.mxu0 0
        %1241 = vmatpush1.bf16.msra.mxu0 0
        %1242 = vmatprep.subr.bf16.mxu0 0
        %1243 = vmatpush1.bf16.msra.mxu0 0
        %1244 = vmatprep.mubr.bf16.mxu0 0
        %1245 = vmatmul.mubr.bf16.gmra.mrb[0].mxu0 %v573
        %v1246 = vpop.f32.mrb[0].mxu0
        %v1247 = vadd.f32 %v1207, %v1246
        %v1248 = vpop.f32.mrb[0].mxu0
        %v1249 = vpop.f32.mrb[0].mxu0
        %v1250 = vpop.f32.mrb[0].mxu0
        %1251 = vdwg.mxu0
        %v1252 = vld [vmem:[%s480] sm:$0x7]
        %v1253 = vsub.f32 %v610, %v1252
        %v1254 = vmul.f32 %v1253, %v1253
        %v1255 = vadd.f32 %v1254, 0.0
        %v1257 = vrot.slane %v1254, 1
        %v1259 = vadd.f32 %v1255, %v1257
        %v1260 = vrot.slane %v1254, 2
        %v1262 = vadd.f32 %v1259, %v1260
        %v1263 = vrsqrt.pop %v1262
        %v1264 = vmul.f32 %v1262, %v1263
        %vm1265 = vcmp.eq.f32.partialorder %v1262, inf
        %v1266 = vsel %vm1265, %v1262, %v1264
        %vm1267 = vcmp.eq.f32.partialorder %v1262, 0.0
        %v1268 = vand.u32 %v1262, 2147483648
        %v1269 = vsel %vm1267, %v1268, %v1266
        %v1270 = vsub.f32 %v701, %v1252
        %v1271 = vmul.f32 %v1270, %v1270
        %v1272 = vadd.f32 %v1271, 0.0
        %v1274 = vrot.slane %v1271, 1
        %v1276 = vadd.f32 %v1272, %v1274
        %v1277 = vrot.slane %v1271, 2
        %v1279 = vadd.f32 %v1276, %v1277
        %v1280 = vrsqrt.pop %v1279
        %v1281 = vmul.f32 %v1279, %v1280
        %vm1282 = vcmp.eq.f32.partialorder %v1279, inf
        %v1283 = vsel %vm1282, %v1279, %v1281
        %vm1284 = vcmp.eq.f32.partialorder %v1279, 0.0
        %v1285 = vand.u32 %v1279, 2147483648
        %v1286 = vsel %vm1284, %v1285, %v1283
        %v1287 = vsub.f32 %v792, %v1252
        %v1288 = vmul.f32 %v1287, %v1287
        %v1289 = vadd.f32 %v1288, 0.0
        %v1291 = vrot.slane %v1288, 1
        %v1293 = vadd.f32 %v1289, %v1291
        %v1294 = vrot.slane %v1288, 2
        %v1296 = vadd.f32 %v1293, %v1294
        %v1297 = vrsqrt.pop %v1296
        %v1298 = vmul.f32 %v1296, %v1297
        %vm1299 = vcmp.eq.f32.partialorder %v1296, inf
        %v1300 = vsel %vm1299, %v1296, %v1298
        %vm1301 = vcmp.eq.f32.partialorder %v1296, 0.0
        %v1302 = vand.u32 %v1296, 2147483648
        %v1303 = vsel %vm1301, %v1302, %v1300
        %v1304 = vsub.f32 %v883, %v1252
        %v1305 = vmul.f32 %v1304, %v1304
        %v1306 = vadd.f32 %v1305, 0.0
        %v1308 = vrot.slane %v1305, 1
        %v1310 = vadd.f32 %v1306, %v1308
        %v1311 = vrot.slane %v1305, 2
        %v1313 = vadd.f32 %v1310, %v1311
        %v1314 = vrsqrt.pop %v1313
        %v1315 = vmul.f32 %v1313, %v1314
        %vm1316 = vcmp.eq.f32.partialorder %v1313, inf
        %v1317 = vsel %vm1316, %v1313, %v1315
        %vm1318 = vcmp.eq.f32.partialorder %v1313, 0.0
        %v1319 = vand.u32 %v1313, 2147483648
        %v1320 = vsel %vm1318, %v1319, %v1317
        %v1321 = vsub.f32 %v974, %v1252
        %v1322 = vmul.f32 %v1321, %v1321
        %v1323 = vadd.f32 %v1322, 0.0
        %v1325 = vrot.slane %v1322, 1
        %v1327 = vadd.f32 %v1323, %v1325
        %v1328 = vrot.slane %v1322, 2
        %v1330 = vadd.f32 %v1327, %v1328
        %v1331 = vrsqrt.pop %v1330
        %v1332 = vmul.f32 %v1330, %v1331
        %vm1333 = vcmp.eq.f32.partialorder %v1330, inf
        %v1334 = vsel %vm1333, %v1330, %v1332
        %vm1335 = vcmp.eq.f32.partialorder %v1330, 0.0
        %v1336 = vand.u32 %v1330, 2147483648
        %v1337 = vsel %vm1335, %v1336, %v1334
        %v1338 = vsub.f32 %v1065, %v1252
        %v1339 = vmul.f32 %v1338, %v1338
        %v1340 = vadd.f32 %v1339, 0.0
        %v1342 = vrot.slane %v1339, 1
        %v1344 = vadd.f32 %v1340, %v1342
        %v1345 = vrot.slane %v1339, 2
        %v1347 = vadd.f32 %v1344, %v1345
        %v1348 = vrsqrt.pop %v1347
        %v1349 = vmul.f32 %v1347, %v1348
        %vm1350 = vcmp.eq.f32.partialorder %v1347, inf
        %v1351 = vsel %vm1350, %v1347, %v1349
        %vm1352 = vcmp.eq.f32.partialorder %v1347, 0.0
        %v1353 = vand.u32 %v1347, 2147483648
        %v1354 = vsel %vm1352, %v1353, %v1351
        %v1355 = vsub.f32 %v1156, %v1252
        %v1356 = vmul.f32 %v1355, %v1355
        %v1357 = vadd.f32 %v1356, 0.0
        %v1359 = vrot.slane %v1356, 1
        %v1361 = vadd.f32 %v1357, %v1359
        %v1362 = vrot.slane %v1356, 2
        %v1364 = vadd.f32 %v1361, %v1362
        %v1365 = vrsqrt.pop %v1364
        %v1366 = vmul.f32 %v1364, %v1365
        %vm1367 = vcmp.eq.f32.partialorder %v1364, inf
        %v1368 = vsel %vm1367, %v1364, %v1366
        %vm1369 = vcmp.eq.f32.partialorder %v1364, 0.0
        %v1370 = vand.u32 %v1364, 2147483648
        %v1371 = vsel %vm1369, %v1370, %v1368
        %v1372 = vsub.f32 %v1247, %v1252
        %v1373 = vmul.f32 %v1372, %v1372
        %v1374 = vadd.f32 %v1373, 0.0
        %v1376 = vrot.slane %v1373, 1
        %v1378 = vadd.f32 %v1374, %v1376
        %v1379 = vrot.slane %v1373, 2
        %v1381 = vadd.f32 %v1378, %v1379
        %v1382 = vrsqrt.pop %v1381
        %v1383 = vmul.f32 %v1381, %v1382
        %vm1384 = vcmp.eq.f32.partialorder %v1381, inf
        %v1385 = vsel %vm1384, %v1381, %v1383
        %vm1386 = vcmp.eq.f32.partialorder %v1381, 0.0
        %v1387 = vand.u32 %v1381, 2147483648
        %v1388 = vsel %vm1386, %v1387, %v1385
        %v1390 = vrot.slane %v1286, 7
        %v1393 = vrot.slane %v1303, 6
        %v1396 = vrot.slane %v1320, 5
        %v1399 = vrot.slane %v1337, 4
        %v1402 = vrot.slane %v1354, 3
        %v1405 = vrot.slane %v1371, 2
        %v1408 = vrot.slane %v1388, 1
        %vm1410 = vcmask 1040384
        %v1411 = vsel %vm1410, %v1269, %v1390
        %vm1412 = vcmask 1041408
        %v1413 = vsel %vm1412, %v1411, %v1393
        %vm1414 = vcmask 1042432
        %v1415 = vsel %vm1414, %v1413, %v1396
        %vm1416 = vcmask 1043456
        %v1417 = vsel %vm1416, %v1415, %v1399
        %vm1418 = vcmask 1044480
        %v1419 = vsel %vm1418, %v1417, %v1402
        %vm1420 = vcmask 1045504
        %v1421 = vsel %vm1420, %v1419, %v1405
        %vm1422 = vcmask 1046528
        %v1423 = vsel %vm1422, %v1421, %v1408
        %v1424 = vld [vmem:[%s494] sm:$0xff]
        %s1425 = sld [smem:[#allocation7]]
        %v1426 = vstv %s1425
        %vm1427 = vcmp.eq.s32.totalorder %v1424, %v1426
        %v1428 = vsel %vm1427, 1, 0
        %v1429 = vcvt.s32.f32 %v1428
        %s1430 = sld [smem:[#allocation7 + $0x1]]
        %v1431 = vstv %s1430
        %vm1432 = vcmp.eq.s32.totalorder %v1424, %v1431
        %v1433 = vsel %vm1432, 1, 0
        %v1434 = vcvt.s32.f32 %v1433
        %s1435 = sld [smem:[#allocation7 + $0x2]]
        %v1436 = vstv %s1435
        %vm1437 = vcmp.eq.s32.totalorder %v1424, %v1436
        %v1438 = vsel %vm1437, 1, 0
        %v1439 = vcvt.s32.f32 %v1438
        %s1440 = sld [smem:[#allocation2]]
        %s1441 = sld [smem:[#allocation4]]
        %s1442 = sld [smem:[#allocation6]]
        %s1443 = ssub.f32 0.0, %s1442
        %v1444 = vstv %s1441
        %v1445 = vsub.f32 %v1423, %v1444
        %v1446 = vmul.f32 %v1445, %v1445
        %v1447 = vstv %s1443
        %v1448 = vmul.f32 %v1447, %v1446
        %v1449 = vmul.f32 %v1448, 1.442695
        %v1450 = vpow.pop %v1449
        %v1451 = vstv %s1440
        %vm1452 = vcmp.le.f32.partialorder %v1423, %v1451
        %v1453 = vmul.f32 %v1423, 3.1415927
        %v1454 = vrcp.pop %v1451
        %v1455 = vmul.f32 %v1453, %v1454
        %v1456 = vand.u32 2147483647, %v1455
        %vm1457 = vcmp.le.f32.partialorder %v1456, 0.7853982
        %vm1458 = vcmp.lt.s32.totalorder %v1455, 0
        %v1459 = vand.u32 %v1455, 2139095040
        %v1460 = vshrl.u32 %v1459, 23
        %v1461 = vsub.s32 %v1460, 127
        %v1462 = vand.u32 2147483647, %v1455
        %v1463 = vand.u32 %v1462, 8388607
        %v1464 = vor.u32 %v1463, 8388608
        %v1465 = vsub.s32 0, %v1464
        %v1466 = vadd.s32 %v1461, 1
        %vm1467 = vcmp.gt.s32.totalorder %v1466, 0
        %v1468 = vsel %vm1467, %v1466, 0
        %v1469 = vshrl.u32 %v1468, 5
        %v1470 = vand.u32 %v1468, 31
        %v1471 = vsub.s32 32, %v1470
        %v1472 = vshrl.u32 683565275, %v1471
        %v1473 = vshll.u32 683565275, %v1470
        %v1474 = vshrl.u32 2475754826, %v1471
        %v1475 = vor.u32 %v1473, %v1474
        %v1476 = vshll.u32 2475754826, %v1470
        %v1477 = vshrl.u32 2131351028, %v1471
        %v1478 = vor.u32 %v1476, %v1477
        %v1479 = vshll.u32 2131351028, %v1470
        %v1480 = vshrl.u32 2102212464, %v1471
        %v1481 = vor.u32 %v1479, %v1480
        %v1482 = vshll.u32 2102212464, %v1470
        %v1483 = vshrl.u32 920167782, %v1471
        %v1484 = vor.u32 %v1482, %v1483
        %v1485 = vshll.u32 920167782, %v1470
        %v1486 = vshrl.u32 1326507024, %v1471
        %v1487 = vor.u32 %v1485, %v1486
        %vm1488 = vcmp.lt.s32.totalorder %v1469, 1
        %vm1489 = vcmp.lt.s32.totalorder %v1469, 2
        %vm1490 = vcmp.lt.s32.totalorder %v1469, 3
        %vm1491 = vcmp.lt.s32.totalorder %v1469, 4
        %v1492 = vsel %vm1488, %v1472, %v1475
        %v1493 = vsel %vm1491, %v1481, 2102212464
        %v1494 = vsel %vm1490, %v1478, %v1493
        %v1495 = vsel %vm1489, %v1492, %v1494
        %v1496 = vsel %vm1488, %v1475, %v1478
        %v1497 = vsel %vm1491, %v1484, 920167782
        %v1498 = vsel %vm1490, %v1481, %v1497
        %v1499 = vsel %vm1489, %v1496, %v1498
        %v1500 = vsel %vm1488, %v1478, %v1481
        %v1501 = vsel %vm1491, %v1487, 1326507024
        %v1502 = vsel %vm1490, %v1484, %v1501
        %v1503 = vsel %vm1489, %v1500, %v1502
        %v1504 = vshll.u32 %v1464, 8
        %v1505 = vmul.u32.u64.compose %v1504, %v1503
        %v1506 = vextract.low.u32 %v1505
        %v1507 = vextract.high.u32 %v1505
        %v1508 = vmul.u32.u64.compose %v1504, %v1499
        %v1509 = vextract.low.u32 %v1508
        %v1510 = vextract.high.u32 %v1508
        %v1511 = vmul.u32 %v1504, %v1495
        %v1512 = vadd.s32 %v1507, %v1509
        %vm1513 = vc.u32 %v1507, %v1509
        %v1514 = vadd.s32 %v1510, 1
        %v1515 = vsel %vm1513, %v1514, %v1510
        %v1516 = vadd.s32 %v1511, %v1515
        %v1517 = vadd.s32 %v1516, 536870912
        %v1518 = vshrl.u32 %v1517, 30
        %v1519 = vshll.u32 %v1518, 30
        %v1520 = vsub.s32 %v1516, %v1519
        %vm1521 = vcmp.lt.s32.totalorder %v1520, 0
        %v1522 = vsub.s32 0, %v1520
        %v1523 = vsel %vm1521, %v1522, %v1520
        %v1524 = vclz %v1523
        %v1525 = vsub.s32 %v1524, 2
        %vm1526 = vcmp.gt.s32.totalorder 0, %v1525
        %v1527 = vsel %vm1526, 0, %v1525
        %v1528 = vsub.s32 32, %v1527
        %v1529 = vshll.u32 %v1520, %v1527
        %v1530 = vshrl.u32 %v1512, %v1528
        %v1531 = vor.u32 %v1529, %v1530
        %v1532 = vsub.s32 4294967266, %v1527
        %v1533 = vadd.s32 %v1532, 127
        %v1534 = vshll.u32 %v1533, 23
        %v1535 = vor.u32 4788187, %v1534
        %v1536 = vand.u32 2147483647, %v1535
        %v1538 = vcvt.s32.f32 %v1531
        %v1539 = vmul.f32 %v1538, %v1536
        %v1540 = vxor.u32 %v1539, 2147483648
        %v1541 = vsel %vm1458, %v1540, %v1539
        %v1542 = vsub.s32 4, %v1518
        %v1543 = vsel %vm1458, %v1542, %v1518
        %v1544 = vsel %vm1457, %v1455, %v1541
        %v1545 = vsel %vm1457, 0, %v1543
        %v1546 = vcosq.f32.pop %v1544
        %v1547 = vsinq.f32.pop %v1544
        %vm1548 = vweird.f32 %v1455
        %v1549 = vand.u32 %v1545, 3
        %vm1550 = vcmp.lt.s32.totalorder %v1549, 2
        %vm1551 = vcmp.eq.s32.totalorder %v1549, 0
        %v1552 = vxor.u32 %v1547, 2147483648
        %v1553 = vsel %vm1551, %v1546, %v1552
        %vm1554 = vcmp.eq.s32.totalorder %v1549, 2
        %v1555 = vxor.u32 %v1546, 2147483648
        %v1556 = vsel %vm1554, %v1555, %v1547
        %v1557 = vsel %vm1550, %v1553, %v1556
        %v1558 = vsel %vm1548, nan, %v1557
        %v1559 = vadd.f32 %v1558, 1.0
        %v1560 = vmul.f32 %v1559, 0.5
        %v1561 = vsel %vm1452, %v1560, 0.0
        %v1562 = vmul.f32 %v1450, %v1561
        %v1563 = vmul.f32 %v1429, %v1562
        %v1564 = vsel %vm528, %v1563, 0.0
        %v1565 = vrot.slane %v1564, 4
        %v1566 = vadd.f32 %v1564, %v1565
        %v1567 = vrot.slane %v1566, 2
        %v1568 = vadd.f32 %v1566, %v1567
        %v1569 = vrot.slane %v1568, 1
        %v1570 = vadd.f32 %v1568, %v1569
        %vm1571 = vcmask 122880
        %1572 = vst.msk [vmem:[%s502] sm:$0x1] %vm1571, %v1570
        %v1573 = vmul.f32 %v1434, %v1562
        %v1574 = vsel %vm528, %v1573, 0.0
        %v1575 = vrot.slane %v1574, 4
        %v1576 = vadd.f32 %v1574, %v1575
        %v1577 = vrot.slane %v1576, 2
        %v1578 = vadd.f32 %v1576, %v1577
        %v1579 = vrot.slane %v1578, 1
        %v1580 = vadd.f32 %v1578, %v1579
        %1581 = vst.msk [vmem:[%s502 + $0x4] sm:$0x1] %vm1571, %v1580
        %v1582 = vmul.f32 %v1439, %v1562
        %v1583 = vsel %vm528, %v1582, 0.0
        %v1584 = vrot.slane %v1583, 4
        %v1585 = vadd.f32 %v1583, %v1584
        %v1586 = vrot.slane %v1585, 2
        %v1587 = vadd.f32 %v1585, %v1586
        %v1588 = vrot.slane %v1587, 1
        %v1589 = vadd.f32 %v1587, %v1588
        %1590 = vst.msk [vmem:[%s502 + $0x8] sm:$0x1] %vm1571, %v1589
        %s1591 = sld [smem:[#allocation2 + $0x1]]
        %s1592 = sld [smem:[#allocation4 + $0x1]]
        %s1593 = sld [smem:[#allocation6 + $0x1]]
        %s1594 = ssub.f32 0.0, %s1593
        %v1595 = vstv %s1592
        %v1596 = vsub.f32 %v1423, %v1595
        %v1597 = vmul.f32 %v1596, %v1596
        %v1598 = vstv %s1594
        %v1599 = vmul.f32 %v1598, %v1597
        %v1600 = vmul.f32 %v1599, 1.442695
        %v1601 = vpow.pop %v1600
        %v1602 = vstv %s1591
        %vm1603 = vcmp.le.f32.partialorder %v1423, %v1602
        %v1604 = vrcp.pop %v1602
        %v1605 = vmul.f32 %v1453, %v1604
        %v1606 = vand.u32 2147483647, %v1605
        %vm1607 = vcmp.le.f32.partialorder %v1606, 0.7853982
        %vm1608 = vcmp.lt.s32.totalorder %v1605, 0
        %v1609 = vand.u32 %v1605, 2139095040
        %v1610 = vshrl.u32 %v1609, 23
        %v1611 = vsub.s32 %v1610, 127
        %v1612 = vand.u32 2147483647, %v1605
        %v1613 = vand.u32 %v1612, 8388607
        %v1614 = vor.u32 %v1613, 8388608
        %v1615 = vsub.s32 0, %v1614
        %v1616 = vadd.s32 %v1611, 1
        %vm1617 = vcmp.gt.s32.totalorder %v1616, 0
        %v1618 = vsel %vm1617, %v1616, 0
        %v1619 = vshrl.u32 %v1618, 5
        %v1620 = vand.u32 %v1618, 31
        %v1621 = vsub.s32 32, %v1620
        %v1622 = vshrl.u32 683565275, %v1621
        %v1623 = vshll.u32 683565275, %v1620
        %v1624 = vshrl.u32 2475754826, %v1621
        %v1625 = vor.u32 %v1623, %v1624
        %v1626 = vshll.u32 2475754826, %v1620
        %v1627 = vshrl.u32 2131351028, %v1621
        %v1628 = vor.u32 %v1626, %v1627
        %v1629 = vshll.u32 2131351028, %v1620
        %v1630 = vshrl.u32 2102212464, %v1621
        %v1631 = vor.u32 %v1629, %v1630
        %v1632 = vshll.u32 2102212464, %v1620
        %v1633 = vshrl.u32 920167782, %v1621
        %v1634 = vor.u32 %v1632, %v1633
        %v1635 = vshll.u32 920167782, %v1620
        %v1636 = vshrl.u32 1326507024, %v1621
        %v1637 = vor.u32 %v1635, %v1636
        %vm1638 = vcmp.lt.s32.totalorder %v1619, 1
        %vm1639 = vcmp.lt.s32.totalorder %v1619, 2
        %vm1640 = vcmp.lt.s32.totalorder %v1619, 3
        %vm1641 = vcmp.lt.s32.totalorder %v1619, 4
        %v1642 = vsel %vm1638, %v1622, %v1625
        %v1643 = vsel %vm1641, %v1631, 2102212464
        %v1644 = vsel %vm1640, %v1628, %v1643
        %v1645 = vsel %vm1639, %v1642, %v1644
        %v1646 = vsel %vm1638, %v1625, %v1628
        %v1647 = vsel %vm1641, %v1634, 920167782
        %v1648 = vsel %vm1640, %v1631, %v1647
        %v1649 = vsel %vm1639, %v1646, %v1648
        %v1650 = vsel %vm1638, %v1628, %v1631
        %v1651 = vsel %vm1641, %v1637, 1326507024
        %v1652 = vsel %vm1640, %v1634, %v1651
        %v1653 = vsel %vm1639, %v1650, %v1652
        %v1654 = vshll.u32 %v1614, 8
        %v1655 = vmul.u32.u64.compose %v1654, %v1653
        %v1656 = vextract.low.u32 %v1655
        %v1657 = vextract.high.u32 %v1655
        %v1658 = vmul.u32.u64.compose %v1654, %v1649
        %v1659 = vextract.low.u32 %v1658
        %v1660 = vextract.high.u32 %v1658
        %v1661 = vmul.u32 %v1654, %v1645
        %v1662 = vadd.s32 %v1657, %v1659
        %vm1663 = vc.u32 %v1657, %v1659
        %v1664 = vadd.s32 %v1660, 1
        %v1665 = vsel %vm1663, %v1664, %v1660
        %v1666 = vadd.s32 %v1661, %v1665
        %v1667 = vadd.s32 %v1666, 536870912
        %v1668 = vshrl.u32 %v1667, 30
        %v1669 = vshll.u32 %v1668, 30
        %v1670 = vsub.s32 %v1666, %v1669
        %vm1671 = vcmp.lt.s32.totalorder %v1670, 0
        %v1672 = vsub.s32 0, %v1670
        %v1673 = vsel %vm1671, %v1672, %v1670
        %v1674 = vclz %v1673
        %v1675 = vsub.s32 %v1674, 2
        %vm1676 = vcmp.gt.s32.totalorder 0, %v1675
        %v1677 = vsel %vm1676, 0, %v1675
        %v1678 = vsub.s32 32, %v1677
        %v1679 = vshll.u32 %v1670, %v1677
        %v1680 = vshrl.u32 %v1662, %v1678
        %v1681 = vor.u32 %v1679, %v1680
        %v1682 = vsub.s32 4294967266, %v1677
        %v1683 = vadd.s32 %v1682, 127
        %v1684 = vshll.u32 %v1683, 23
        %v1685 = vor.u32 4788187, %v1684
        %v1686 = vand.u32 2147483647, %v1685
        %v1688 = vcvt.s32.f32 %v1681
        %v1689 = vmul.f32 %v1688, %v1686
        %v1690 = vxor.u32 %v1689, 2147483648
        %v1691 = vsel %vm1608, %v1690, %v1689
        %v1692 = vsub.s32 4, %v1668
        %v1693 = vsel %vm1608, %v1692, %v1668
        %v1694 = vsel %vm1607, %v1605, %v1691
        %v1695 = vsel %vm1607, 0, %v1693
        %v1696 = vcosq.f32.pop %v1694
        %v1697 = vsinq.f32.pop %v1694
        %vm1698 = vweird.f32 %v1605
        %v1699 = vand.u32 %v1695, 3
        %vm1700 = vcmp.lt.s32.totalorder %v1699, 2
        %vm1701 = vcmp.eq.s32.totalorder %v1699, 0
        %v1702 = vxor.u32 %v1697, 2147483648
        %v1703 = vsel %vm1701, %v1696, %v1702
        %vm1704 = vcmp.eq.s32.totalorder %v1699, 2
        %v1705 = vxor.u32 %v1696, 2147483648
        %v1706 = vsel %vm1704, %v1705, %v1697
        %v1707 = vsel %vm1700, %v1703, %v1706
        %v1708 = vsel %vm1698, nan, %v1707
        %v1709 = vadd.f32 %v1708, 1.0
        %v1710 = vmul.f32 %v1709, 0.5
        %v1711 = vsel %vm1603, %v1710, 0.0
        %v1712 = vmul.f32 %v1601, %v1711
        %v1713 = vmul.f32 %v1429, %v1712
        %v1714 = vsel %vm528, %v1713, 0.0
        %v1715 = vrot.slane %v1714, 4
        %v1716 = vadd.f32 %v1714, %v1715
        %v1717 = vrot.slane %v1716, 2
        %v1718 = vadd.f32 %v1716, %v1717
        %v1719 = vrot.slane %v1718, 1
        %v1720 = vadd.f32 %v1718, %v1719
        %1721 = vst.msk [vmem:[%s502 + $0x1] sm:$0x1] %vm1571, %v1720
        %v1722 = vmul.f32 %v1434, %v1712
        %v1723 = vsel %vm528, %v1722, 0.0
        %v1724 = vrot.slane %v1723, 4
        %v1725 = vadd.f32 %v1723, %v1724
        %v1726 = vrot.slane %v1725, 2
        %v1727 = vadd.f32 %v1725, %v1726
        %v1728 = vrot.slane %v1727, 1
        %v1729 = vadd.f32 %v1727, %v1728
        %1730 = vst.msk [vmem:[%s502 + $0x5] sm:$0x1] %vm1571, %v1729
        %v1731 = vmul.f32 %v1439, %v1712
        %v1732 = vsel %vm528, %v1731, 0.0
        %v1733 = vrot.slane %v1732, 4
        %v1734 = vadd.f32 %v1732, %v1733
        %v1735 = vrot.slane %v1734, 2
        %v1736 = vadd.f32 %v1734, %v1735
        %v1737 = vrot.slane %v1736, 1
        %v1738 = vadd.f32 %v1736, %v1737
        %1739 = vst.msk [vmem:[%s502 + $0x9] sm:$0x1] %vm1571, %v1738
        %s1740 = sld [smem:[#allocation2 + $0x2]]
        %s1741 = sld [smem:[#allocation4 + $0x2]]
        %s1742 = sld [smem:[#allocation6 + $0x2]]
        %s1743 = ssub.f32 0.0, %s1742
        %v1744 = vstv %s1741
        %v1745 = vsub.f32 %v1423, %v1744
        %v1746 = vmul.f32 %v1745, %v1745
        %v1747 = vstv %s1743
        %v1748 = vmul.f32 %v1747, %v1746
        %v1749 = vmul.f32 %v1748, 1.442695
        %v1750 = vpow.pop %v1749
        %v1751 = vstv %s1740
        %vm1752 = vcmp.le.f32.partialorder %v1423, %v1751
        %v1753 = vrcp.pop %v1751
        %v1754 = vmul.f32 %v1453, %v1753
        %v1755 = vand.u32 2147483647, %v1754
        %vm1756 = vcmp.le.f32.partialorder %v1755, 0.7853982
        %vm1757 = vcmp.lt.s32.totalorder %v1754, 0
        %v1758 = vand.u32 %v1754, 2139095040
        %v1759 = vshrl.u32 %v1758, 23
        %v1760 = vsub.s32 %v1759, 127
        %v1761 = vand.u32 2147483647, %v1754
        %v1762 = vand.u32 %v1761, 8388607
        %v1763 = vor.u32 %v1762, 8388608
        %v1764 = vsub.s32 0, %v1763
        %v1765 = vadd.s32 %v1760, 1
        %vm1766 = vcmp.gt.s32.totalorder %v1765, 0
        %v1767 = vsel %vm1766, %v1765, 0
        %v1768 = vshrl.u32 %v1767, 5
        %v1769 = vand.u32 %v1767, 31
        %v1770 = vsub.s32 32, %v1769
        %v1771 = vshrl.u32 683565275, %v1770
        %v1772 = vshll.u32 683565275, %v1769
        %v1773 = vshrl.u32 2475754826, %v1770
        %v1774 = vor.u32 %v1772, %v1773
        %v1775 = vshll.u32 2475754826, %v1769
        %v1776 = vshrl.u32 2131351028, %v1770
        %v1777 = vor.u32 %v1775, %v1776
        %v1778 = vshll.u32 2131351028, %v1769
        %v1779 = vshrl.u32 2102212464, %v1770
        %v1780 = vor.u32 %v1778, %v1779
        %v1781 = vshll.u32 2102212464, %v1769
        %v1782 = vshrl.u32 920167782, %v1770
        %v1783 = vor.u32 %v1781, %v1782
        %v1784 = vshll.u32 920167782, %v1769
        %v1785 = vshrl.u32 1326507024, %v1770
        %v1786 = vor.u32 %v1784, %v1785
        %vm1787 = vcmp.lt.s32.totalorder %v1768, 1
        %vm1788 = vcmp.lt.s32.totalorder %v1768, 2
        %vm1789 = vcmp.lt.s32.totalorder %v1768, 3
        %vm1790 = vcmp.lt.s32.totalorder %v1768, 4
        %v1791 = vsel %vm1787, %v1771, %v1774
        %v1792 = vsel %vm1790, %v1780, 2102212464
        %v1793 = vsel %vm1789, %v1777, %v1792
        %v1794 = vsel %vm1788, %v1791, %v1793
        %v1795 = vsel %vm1787, %v1774, %v1777
        %v1796 = vsel %vm1790, %v1783, 920167782
        %v1797 = vsel %vm1789, %v1780, %v1796
        %v1798 = vsel %vm1788, %v1795, %v1797
        %v1799 = vsel %vm1787, %v1777, %v1780
        %v1800 = vsel %vm1790, %v1786, 1326507024
        %v1801 = vsel %vm1789, %v1783, %v1800
        %v1802 = vsel %vm1788, %v1799, %v1801
        %v1803 = vshll.u32 %v1763, 8
        %v1804 = vmul.u32.u64.compose %v1803, %v1802
        %v1805 = vextract.low.u32 %v1804
        %v1806 = vextract.high.u32 %v1804
        %v1807 = vmul.u32.u64.compose %v1803, %v1798
        %v1808 = vextract.low.u32 %v1807
        %v1809 = vextract.high.u32 %v1807
        %v1810 = vmul.u32 %v1803, %v1794
        %v1811 = vadd.s32 %v1806, %v1808
        %vm1812 = vc.u32 %v1806, %v1808
        %v1813 = vadd.s32 %v1809, 1
        %v1814 = vsel %vm1812, %v1813, %v1809
        %v1815 = vadd.s32 %v1810, %v1814
        %v1816 = vadd.s32 %v1815, 536870912
        %v1817 = vshrl.u32 %v1816, 30
        %v1818 = vshll.u32 %v1817, 30
        %v1819 = vsub.s32 %v1815, %v1818
        %vm1820 = vcmp.lt.s32.totalorder %v1819, 0
        %v1821 = vsub.s32 0, %v1819
        %v1822 = vsel %vm1820, %v1821, %v1819
        %v1823 = vclz %v1822
        %v1824 = vsub.s32 %v1823, 2
        %vm1825 = vcmp.gt.s32.totalorder 0, %v1824
        %v1826 = vsel %vm1825, 0, %v1824
        %v1827 = vsub.s32 32, %v1826
        %v1828 = vshll.u32 %v1819, %v1826
        %v1829 = vshrl.u32 %v1811, %v1827
        %v1830 = vor.u32 %v1828, %v1829
        %v1831 = vsub.s32 4294967266, %v1826
        %v1832 = vadd.s32 %v1831, 127
        %v1833 = vshll.u32 %v1832, 23
        %v1834 = vor.u32 4788187, %v1833
        %v1835 = vand.u32 2147483647, %v1834
        %v1837 = vcvt.s32.f32 %v1830
        %v1838 = vmul.f32 %v1837, %v1835
        %v1839 = vxor.u32 %v1838, 2147483648
        %v1840 = vsel %vm1757, %v1839, %v1838
        %v1841 = vsub.s32 4, %v1817
        %v1842 = vsel %vm1757, %v1841, %v1817
        %v1843 = vsel %vm1756, %v1754, %v1840
        %v1844 = vsel %vm1756, 0, %v1842
        %v1845 = vcosq.f32.pop %v1843
        %v1846 = vsinq.f32.pop %v1843
        %vm1847 = vweird.f32 %v1754
        %v1848 = vand.u32 %v1844, 3
        %vm1849 = vcmp.lt.s32.totalorder %v1848, 2
        %vm1850 = vcmp.eq.s32.totalorder %v1848, 0
        %v1851 = vxor.u32 %v1846, 2147483648
        %v1852 = vsel %vm1850, %v1845, %v1851
        %vm1853 = vcmp.eq.s32.totalorder %v1848, 2
        %v1854 = vxor.u32 %v1845, 2147483648
        %v1855 = vsel %vm1853, %v1854, %v1846
        %v1856 = vsel %vm1849, %v1852, %v1855
        %v1857 = vsel %vm1847, nan, %v1856
        %v1858 = vadd.f32 %v1857, 1.0
        %v1859 = vmul.f32 %v1858, 0.5
        %v1860 = vsel %vm1752, %v1859, 0.0
        %v1861 = vmul.f32 %v1750, %v1860
        %v1862 = vmul.f32 %v1429, %v1861
        %v1863 = vsel %vm528, %v1862, 0.0
        %v1864 = vrot.slane %v1863, 4
        %v1865 = vadd.f32 %v1863, %v1864
        %v1866 = vrot.slane %v1865, 2
        %v1867 = vadd.f32 %v1865, %v1866
        %v1868 = vrot.slane %v1867, 1
        %v1869 = vadd.f32 %v1867, %v1868
        %1870 = vst.msk [vmem:[%s502 + $0x2] sm:$0x1] %vm1571, %v1869
        %v1871 = vmul.f32 %v1434, %v1861
        %v1872 = vsel %vm528, %v1871, 0.0
        %v1873 = vrot.slane %v1872, 4
        %v1874 = vadd.f32 %v1872, %v1873
        %v1875 = vrot.slane %v1874, 2
        %v1876 = vadd.f32 %v1874, %v1875
        %v1877 = vrot.slane %v1876, 1
        %v1878 = vadd.f32 %v1876, %v1877
        %1879 = vst.msk [vmem:[%s502 + $0x6] sm:$0x1] %vm1571, %v1878
        %v1880 = vmul.f32 %v1439, %v1861
        %v1881 = vsel %vm528, %v1880, 0.0
        %v1882 = vrot.slane %v1881, 4
        %v1883 = vadd.f32 %v1881, %v1882
        %v1884 = vrot.slane %v1883, 2
        %v1885 = vadd.f32 %v1883, %v1884
        %v1886 = vrot.slane %v1885, 1
        %v1887 = vadd.f32 %v1885, %v1886
        %1888 = vst.msk [vmem:[%s502 + $0xa] sm:$0x1] %vm1571, %v1887
        %s1889 = sld [smem:[#allocation2 + $0x3]]
        %s1890 = sld [smem:[#allocation4 + $0x3]]
        %s1891 = sld [smem:[#allocation6 + $0x3]]
        %s1892 = ssub.f32 0.0, %s1891
        %v1893 = vstv %s1890
        %v1894 = vsub.f32 %v1423, %v1893
        %v1895 = vmul.f32 %v1894, %v1894
        %v1896 = vstv %s1892
        %v1897 = vmul.f32 %v1896, %v1895
        %v1898 = vmul.f32 %v1897, 1.442695
        %v1899 = vpow.pop %v1898
        %v1900 = vstv %s1889
        %vm1901 = vcmp.le.f32.partialorder %v1423, %v1900
        %v1902 = vrcp.pop %v1900
        %v1903 = vmul.f32 %v1453, %v1902
        %v1904 = vand.u32 2147483647, %v1903
        %vm1905 = vcmp.le.f32.partialorder %v1904, 0.7853982
        %vm1906 = vcmp.lt.s32.totalorder %v1903, 0
        %v1907 = vand.u32 %v1903, 2139095040
        %v1908 = vshrl.u32 %v1907, 23
        %v1909 = vsub.s32 %v1908, 127
        %v1910 = vand.u32 2147483647, %v1903
        %v1911 = vand.u32 %v1910, 8388607
        %v1912 = vor.u32 %v1911, 8388608
        %v1913 = vsub.s32 0, %v1912
        %v1914 = vadd.s32 %v1909, 1
        %vm1915 = vcmp.gt.s32.totalorder %v1914, 0
        %v1916 = vsel %vm1915, %v1914, 0
        %v1917 = vshrl.u32 %v1916, 5
        %v1918 = vand.u32 %v1916, 31
        %v1919 = vsub.s32 32, %v1918
        %v1920 = vshrl.u32 683565275, %v1919
        %v1921 = vshll.u32 683565275, %v1918
        %v1922 = vshrl.u32 2475754826, %v1919
        %v1923 = vor.u32 %v1921, %v1922
        %v1924 = vshll.u32 2475754826, %v1918
        %v1925 = vshrl.u32 2131351028, %v1919
        %v1926 = vor.u32 %v1924, %v1925
        %v1927 = vshll.u32 2131351028, %v1918
        %v1928 = vshrl.u32 2102212464, %v1919
        %v1929 = vor.u32 %v1927, %v1928
        %v1930 = vshll.u32 2102212464, %v1918
        %v1931 = vshrl.u32 920167782, %v1919
        %v1932 = vor.u32 %v1930, %v1931
        %v1933 = vshll.u32 920167782, %v1918
        %v1934 = vshrl.u32 1326507024, %v1919
        %v1935 = vor.u32 %v1933, %v1934
        %vm1936 = vcmp.lt.s32.totalorder %v1917, 1
        %vm1937 = vcmp.lt.s32.totalorder %v1917, 2
        %vm1938 = vcmp.lt.s32.totalorder %v1917, 3
        %vm1939 = vcmp.lt.s32.totalorder %v1917, 4
        %v1940 = vsel %vm1936, %v1920, %v1923
        %v1941 = vsel %vm1939, %v1929, 2102212464
        %v1942 = vsel %vm1938, %v1926, %v1941
        %v1943 = vsel %vm1937, %v1940, %v1942
        %v1944 = vsel %vm1936, %v1923, %v1926
        %v1945 = vsel %vm1939, %v1932, 920167782
        %v1946 = vsel %vm1938, %v1929, %v1945
        %v1947 = vsel %vm1937, %v1944, %v1946
        %v1948 = vsel %vm1936, %v1926, %v1929
        %v1949 = vsel %vm1939, %v1935, 1326507024
        %v1950 = vsel %vm1938, %v1932, %v1949
        %v1951 = vsel %vm1937, %v1948, %v1950
        %v1952 = vshll.u32 %v1912, 8
        %v1953 = vmul.u32.u64.compose %v1952, %v1951
        %v1954 = vextract.low.u32 %v1953
        %v1955 = vextract.high.u32 %v1953
        %v1956 = vmul.u32.u64.compose %v1952, %v1947
        %v1957 = vextract.low.u32 %v1956
        %v1958 = vextract.high.u32 %v1956
        %v1959 = vmul.u32 %v1952, %v1943
        %v1960 = vadd.s32 %v1955, %v1957
        %vm1961 = vc.u32 %v1955, %v1957
        %v1962 = vadd.s32 %v1958, 1
        %v1963 = vsel %vm1961, %v1962, %v1958
        %v1964 = vadd.s32 %v1959, %v1963
        %v1965 = vadd.s32 %v1964, 536870912
        %v1966 = vshrl.u32 %v1965, 30
        %v1967 = vshll.u32 %v1966, 30
        %v1968 = vsub.s32 %v1964, %v1967
        %vm1969 = vcmp.lt.s32.totalorder %v1968, 0
        %v1970 = vsub.s32 0, %v1968
        %v1971 = vsel %vm1969, %v1970, %v1968
        %v1972 = vclz %v1971
        %v1973 = vsub.s32 %v1972, 2
        %vm1974 = vcmp.gt.s32.totalorder 0, %v1973
        %v1975 = vsel %vm1974, 0, %v1973
        %v1976 = vsub.s32 32, %v1975
        %v1977 = vshll.u32 %v1968, %v1975
        %v1978 = vshrl.u32 %v1960, %v1976
        %v1979 = vor.u32 %v1977, %v1978
        %v1980 = vsub.s32 4294967266, %v1975
        %v1981 = vadd.s32 %v1980, 127
        %v1982 = vshll.u32 %v1981, 23
        %v1983 = vor.u32 4788187, %v1982
        %v1984 = vand.u32 2147483647, %v1983
        %v1986 = vcvt.s32.f32 %v1979
        %v1987 = vmul.f32 %v1986, %v1984
        %v1988 = vxor.u32 %v1987, 2147483648
        %v1989 = vsel %vm1906, %v1988, %v1987
        %v1990 = vsub.s32 4, %v1966
        %v1991 = vsel %vm1906, %v1990, %v1966
        %v1992 = vsel %vm1905, %v1903, %v1989
        %v1993 = vsel %vm1905, 0, %v1991
        %v1994 = vcosq.f32.pop %v1992
        %v1995 = vsinq.f32.pop %v1992
        %vm1996 = vweird.f32 %v1903
        %v1997 = vand.u32 %v1993, 3
        %vm1998 = vcmp.lt.s32.totalorder %v1997, 2
        %vm1999 = vcmp.eq.s32.totalorder %v1997, 0
        %v2000 = vxor.u32 %v1995, 2147483648
        %v2001 = vsel %vm1999, %v1994, %v2000
        %vm2002 = vcmp.eq.s32.totalorder %v1997, 2
        %v2003 = vxor.u32 %v1994, 2147483648
        %v2004 = vsel %vm2002, %v2003, %v1995
        %v2005 = vsel %vm1998, %v2001, %v2004
        %v2006 = vsel %vm1996, nan, %v2005
        %v2007 = vadd.f32 %v2006, 1.0
        %v2008 = vmul.f32 %v2007, 0.5
        %v2009 = vsel %vm1901, %v2008, 0.0
        %v2010 = vmul.f32 %v1899, %v2009
        %v2011 = vmul.f32 %v1429, %v2010
        %v2012 = vsel %vm528, %v2011, 0.0
        %v2013 = vrot.slane %v2012, 4
        %v2014 = vadd.f32 %v2012, %v2013
        %v2015 = vrot.slane %v2014, 2
        %v2016 = vadd.f32 %v2014, %v2015
        %v2017 = vrot.slane %v2016, 1
        %v2018 = vadd.f32 %v2016, %v2017
        %2019 = vst.msk [vmem:[%s502 + $0x3] sm:$0x1] %vm1571, %v2018
        %v2020 = vmul.f32 %v1434, %v2010
        %v2021 = vsel %vm528, %v2020, 0.0
        %v2022 = vrot.slane %v2021, 4
        %v2023 = vadd.f32 %v2021, %v2022
        %v2024 = vrot.slane %v2023, 2
        %v2025 = vadd.f32 %v2023, %v2024
        %v2026 = vrot.slane %v2025, 1
        %v2027 = vadd.f32 %v2025, %v2026
        %2028 = vst.msk [vmem:[%s502 + $0x7] sm:$0x1] %vm1571, %v2027
        %v2029 = vmul.f32 %v1439, %v2010
        %v2030 = vsel %vm528, %v2029, 0.0
        %v2031 = vrot.slane %v2030, 4
        %v2032 = vadd.f32 %v2030, %v2031
        %v2033 = vrot.slane %v2032, 2
        %v2034 = vadd.f32 %v2032, %v2033
        %v2035 = vrot.slane %v2034, 1
        %v2036 = vadd.f32 %v2034, %v2035
        %2037 = vst.msk [vmem:[%s502 + $0xb] sm:$0x1] %vm1571, %v2036
        %p2038 = scmp.lt.s32.totalorder %s27, 1
        %s2039 = scalar_select %p2038, %s27, 1
        %p2040 = scmp.lt.s32.totalorder %s28, 0
        %s2041 = scalar_select %p2040, %s28, 0
        %s2042 = smul.addr %s2039, 2
        %s2043 = sadd.s32 %s2041, %s2042
        %s2044 = smul.addr %s2043, 8
        %s2045 = scalar_lea.vmem %s9, %s2044
        // Predicated region
        $region73: #{tpu_custom_call.1} parent=55 // pred_check
          %p2046 = pneg %p275
        $region74: #{tpu_custom_call.1} parent=55 // pred_check_branch
          %2048 = sbr.rel (%p2046) target = $region76
        $region75: #{tpu_custom_call.1} parent=55 // pred_region
          _
        $region76: #{tpu_custom_call.1} parent=55 // pred_fallthru
          _
      $region56: #{tpu_custom_call.1} parent=5 // pred_fallthru
        _
      %p2049 = scmp.le.s32.totalorder 2, %s18
      // Predicated region
      $region77: #{tpu_custom_call.1} parent=5 // pred_check
        %p2050 = pneg %p2049
      $region78: #{tpu_custom_call.1} parent=5 // pred_check_branch
        %2052 = sbr.rel (%p2050) target = $region80
      $region79: #{tpu_custom_call.1} parent=5 // pred_region
        %s2053 = ssub.s32 %s18, 2
        // Predicated region
        $region81: #{tpu_custom_call.1} parent=79 // pred_check
          %p2054 = pneg %p281
        $region82: #{tpu_custom_call.1} parent=79 // pred_check_branch
          %2056 = sbr.rel (%p2054) target = $region84
        $region83: #{tpu_custom_call.1} parent=79 // pred_region
          %p2057 = scmp.lt.s32.totalorder %s29, 1
          %s2058 = scalar_select %p2057, %s29, 1
          %p2059 = scmp.lt.s32.totalorder %s30, 0
          %s2060 = scalar_select %p2059, %s30, 0
          %s2061 = smul.addr %s2058, 2
          %s2062 = sadd.s32 %s2060, %s2061
          %s2063 = smul.addr %s2062, 8
          %s2064 = scalar_lea.vmem %s9, %s2063
        $region84: #{tpu_custom_call.1} parent=79 // pred_fallthru
          _
      $region80: #{tpu_custom_call.1} parent=5 // pred_fallthru
        _
    $region6: #{tpu_custom_call.1} parent=1 // loop_footer
      %s22 = sadd.s32 1, %s18
    $region7: #{tpu_custom_call.1} parent=1 // loop_footer_branch
      %17 = sbr.rel target = $region3
    $region8: #{tpu_custom_call.1} parent=1 // loop_exit
      _
    %2065 = vsyncpa [#allocation3], 1
    %s2066 = scalar_lea.sflag [#allocation3], 1
    %2067 = vsyncpa %s2066, 1
    %2068 = vsyncpa [#allocation5], 1
    %2069 = vsyncpa [#allocation8], 1

</llo_original>
